<compile_context>
chip_gen: v7x
topology: tpu7x:2x2x1
jax: 0.10.0
libtpu: 0.0.40
codegen_flags: <defaults>
</compile_context>

<pallas_src>
import functools

import jax
import jax.numpy as jnp
from jax.experimental import pallas as pl
from jax.experimental.pallas import tpu as pltpu

# Matmul operand dtype (accumulation is always f32).  Set to jnp.float32 for bit-closer numerics.
MM_DTYPE = jnp.bfloat16

_LANE = 128          # lane width: last-dim padding granularity
_SUBLANE = 16        # sublane padding granularity (bf16-safe; also fine for f32)
_TIME_CHUNK = 32     # timesteps per grid step (amortizes ~600-cycle per-step grid overhead)
_BATCH_CHUNK = 64    # max batch rows per "parallel" grid slice (megacore work unit)


def _round_up(x, m):
    return (x + m - 1) // m * m


# ----------------------------------------------------------------------------
# Shared per-chunk recurrence body.
#   grid = (batch_chunks, time_chunks); axis 1 is the sequential time axis.
#   h/c persist across time chunks in VMEM scratch; within a chunk they are
#   loop-carried values.  Returns the final h of this chunk.
# ----------------------------------------------------------------------------
def _lstm_chunk_body(x_ref, wih_ref, whh_ref, b_ref, h_scr, c_scr, xg_scr,
                     *, seq_len, chunk_len, emit_h):
    tc = pl.program_id(1)                      # time-chunk index (sequential)

    @pl.when(tc == 0)
    def _():
        h_scr[...] = jnp.zeros_like(h_scr)
        c_scr[...] = jnp.zeros_like(c_scr)

    Tc, Bc, Dp = x_ref.shape
    Hp4 = whh_ref.shape[-1]
    Hp = Hp4 // 4

    # ---- hoisted input projection: ONE (Tc*Bc, Dp) @ (Dp, 4Hp) matmul per chunk,
    #      bias folded in here, outside the serial recurrence. ----
    x2d = x_ref[...].reshape(Tc * Bc, Dp).astype(MM_DTYPE)
    xg = jnp.dot(x2d, wih_ref[...], preferred_element_type=jnp.float32)
    xg_scr[...] = (xg + b_ref[...]).reshape(Tc, Bc, Hp4)

    whh = whh_ref[...]                          # (Hp, 4Hp), MM_DTYPE

    # Number of real (unpadded) timesteps in this chunk.
    n_valid = jnp.minimum(chunk_len, seq_len - tc * chunk_len)

    def step(t, carry):
        h, c = carry                            # f32 (Bc, Hp), vreg resident
        gates = xg_scr[t] + jnp.dot(h.astype(MM_DTYPE), whh,
                                    preferred_element_type=jnp.float32)
        # 128-aligned gate slices (torch order i, f, g, o).
        i_g = jax.nn.sigmoid(gates[:, 0 * Hp:1 * Hp])
        f_g = jax.nn.sigmoid(gates[:, 1 * Hp:2 * Hp])
        g_g = jnp.tanh(gates[:, 2 * Hp:3 * Hp])
        o_g = jax.nn.sigmoid(gates[:, 3 * Hp:4 * Hp])
        c_new = f_g * c + i_g * g_g
        h_new = o_g * jnp.tanh(c_new)
        emit_h(t, h_new)
        return h_new, c_new

    h_fin, c_fin = jax.lax.fori_loop(0, n_valid, step,
                                     (h_scr[...], c_scr[...]))
    h_scr[...] = h_fin
    c_scr[...] = c_fin
    return h_fin


def _lstm_seq_kernel(x_ref, wih_ref, whh_ref, b_ref, out_ref,
                     h_scr, c_scr, xg_scr, *, seq_len, chunk_len):
    """Intermediate layer: streams the full h sequence out (needed by the next layer)."""
    def emit(t, h_new):
        out_ref[t] = h_new.astype(out_ref.dtype)

    _lstm_chunk_body(x_ref, wih_ref, whh_ref, b_ref, h_scr, c_scr, xg_scr,
                     seq_len=seq_len, chunk_len=chunk_len, emit_h=emit)


def _lstm_last_fc_kernel(x_ref, wih_ref, whh_ref, b_ref, fcw_ref, fcb_ref,
                         out_ref, h_scr, c_scr, xg_scr, *, seq_len, chunk_len):
    """Last layer: no sequence output; fuses the FC head on the final hidden state."""
    h_fin = _lstm_chunk_body(x_ref, wih_ref, whh_ref, b_ref, h_scr, c_scr,
                             xg_scr, seq_len=seq_len, chunk_len=chunk_len,
                             emit_h=lambda t, h: None)

    @pl.when(pl.program_id(1) == pl.num_programs(1) - 1)
    def _():
        out_ref[...] = (
            jnp.dot(h_fin.astype(MM_DTYPE), fcw_ref[...],
                    preferred_element_type=jnp.float32) + fcb_ref[...]
        ).astype(out_ref.dtype)


# ----------------------------------------------------------------------------
# pallas_call wrappers
# ----------------------------------------------------------------------------
def _lstm_layer_seq(x_tbd, wih, whh, bias, *, seq_len, chunk_len, batch_chunk):
    Tpad, Bp, Dp = x_tbd.shape
    Hp4 = whh.shape[-1]
    Hp = Hp4 // 4
    n_bc = Bp // batch_chunk
    n_tc = Tpad // chunk_len
    kernel = functools.partial(_lstm_seq_kernel, seq_len=seq_len,
                               chunk_len=chunk_len)
    return pl.pallas_call(
        kernel,
        out_shape=jax.ShapeDtypeStruct((Tpad, Bp, Hp), MM_DTYPE),
        grid_spec=pltpu.PrefetchScalarGridSpec(
            num_scalar_prefetch=0,
            grid=(n_bc, n_tc),
            in_specs=[
                pl.BlockSpec((chunk_len, batch_chunk, Dp), lambda b, c: (c, b, 0)),
                pl.BlockSpec(wih.shape, lambda b, c: (0, 0)),   # weights stay resident
                pl.BlockSpec(whh.shape, lambda b, c: (0, 0)),
                pl.BlockSpec(bias.shape, lambda b, c: (0, 0)),
            ],
            out_specs=pl.BlockSpec((chunk_len, batch_chunk, Hp),
                                   lambda b, c: (c, b, 0)),
            scratch_shapes=[
                pltpu.VMEM((batch_chunk, Hp), jnp.float32),          # h carry
                pltpu.VMEM((batch_chunk, Hp), jnp.float32),          # c carry
                pltpu.VMEM((chunk_len, batch_chunk, Hp4), jnp.float32),  # projected gates
            ],
        ),
        compiler_params=pltpu.CompilerParams(
            dimension_semantics=("parallel", "arbitrary"),
        ),
    )(x_tbd, wih, whh, bias)


def _lstm_layer_last_fc(x_tbd, wih, whh, bias, fc_w, fc_b, *, seq_len,
                        chunk_len, batch_chunk):
    Tpad, Bp, Dp = x_tbd.shape
    Hp4 = whh.shape[-1]
    Hp = Hp4 // 4
    Op = fc_w.shape[-1]
    n_bc = Bp // batch_chunk
    n_tc = Tpad // chunk_len
    kernel = functools.partial(_lstm_last_fc_kernel, seq_len=seq_len,
                               chunk_len=chunk_len)
    return pl.pallas_call(
        kernel,
        out_shape=jax.ShapeDtypeStruct((Bp, Op), jnp.float32),
        grid_spec=pltpu.PrefetchScalarGridSpec(
            num_scalar_prefetch=0,
            grid=(n_bc, n_tc),
            in_specs=[
                pl.BlockSpec((chunk_len, batch_chunk, Dp), lambda b, c: (c, b, 0)),
                pl.BlockSpec(wih.shape, lambda b, c: (0, 0)),
                pl.BlockSpec(whh.shape, lambda b, c: (0, 0)),
                pl.BlockSpec(bias.shape, lambda b, c: (0, 0)),
                pl.BlockSpec(fc_w.shape, lambda b, c: (0, 0)),
                pl.BlockSpec(fc_b.shape, lambda b, c: (0, 0)),
            ],
            out_specs=pl.BlockSpec((batch_chunk, Op), lambda b, c: (b, 0)),
            scratch_shapes=[
                pltpu.VMEM((batch_chunk, Hp), jnp.float32),
                pltpu.VMEM((batch_chunk, Hp), jnp.float32),
                pltpu.VMEM((chunk_len, batch_chunk, Hp4), jnp.float32),
            ],
        ),
        compiler_params=pltpu.CompilerParams(
            dimension_semantics=("parallel", "arbitrary"),
        ),
    )(x_tbd, wih, whh, bias, fc_w, fc_b)


# ----------------------------------------------------------------------------
# Parameter init (PyTorch default U(-1/sqrt(H), 1/sqrt(H))) + lane-aligned packing.
# ----------------------------------------------------------------------------
def _pack_lstm_weight(w, d_in_p, Hp):
    """(4H, d_in) torch layout [i,f,g,o] -> (d_in_p, 4*Hp), each gate 128-lane aligned."""
    H4, d_in = w.shape
    H = H4 // 4
    w4 = jnp.zeros((4, Hp, d_in_p), w.dtype).at[:, :H, :d_in].set(
        w.reshape(4, H, d_in))
    return w4.transpose(2, 0, 1).reshape(d_in_p, 4 * Hp)


def _pack_lstm_bias(b, Hp):
    H = b.shape[0] // 4
    b4 = jnp.zeros((4, Hp), b.dtype).at[:, :H].set(b.reshape(4, H))
    return b4.reshape(1, 4 * Hp)


def init_params(key, input_size, hidden_size, num_layers, output_size):
    Hp = _round_up(hidden_size, _LANE)
    Op = _round_up(output_size, _LANE)
    k = 1.0 / jnp.sqrt(hidden_size)

    packed_layers, raw_layers = [], []
    for layer in range(num_layers):
        d_in = input_size if layer == 0 else hidden_size
        d_in_p = _round_up(input_size, _LANE) if layer == 0 else Hp
        key, k1, k2, k3, k4 = jax.random.split(key, 5)
        w_ih = jax.random.uniform(k1, (4 * hidden_size, d_in), jnp.float32, -k, k)
        w_hh = jax.random.uniform(k2, (4 * hidden_size, hidden_size), jnp.float32, -k, k)
        b_ih = jax.random.uniform(k3, (4 * hidden_size,), jnp.float32, -k, k)
        b_hh = jax.random.uniform(k4, (4 * hidden_size,), jnp.float32, -k, k)
        packed_layers.append({
            "w_ih_t": _pack_lstm_weight(w_ih, d_in_p, Hp).astype(MM_DTYPE),
            "w_hh_t": _pack_lstm_weight(w_hh, Hp, Hp).astype(MM_DTYPE),
            "bias": _pack_lstm_bias(b_ih + b_hh, Hp),          # f32, folded once
        })
        raw_layers.append((w_ih, w_hh, b_ih, b_hh))

    key, k5, k6 = jax.random.split(key, 3)
    w_fc = jax.random.uniform(k5, (output_size, hidden_size), jnp.float32, -k, k)
    b_fc = jax.random.uniform(k6, (output_size,), jnp.float32, -k, k)
    fc_w_t = jnp.zeros((Hp, Op), jnp.float32).at[:hidden_size, :output_size].set(w_fc.T)
    fc_b = jnp.zeros((1, Op), jnp.float32).at[0, :output_size].set(b_fc)

    params = {
        "layers": packed_layers,
        "fc_w_t": fc_w_t.astype(MM_DTYPE),
        "fc_b": fc_b,
    }
    raw = {"layers": raw_layers, "fc_w": w_fc, "fc_b": b_fc}
    return params, raw


# ----------------------------------------------------------------------------
# Forward pass matching the PyTorch module: x (B, T, input) -> y (B, output)
# ----------------------------------------------------------------------------
@functools.partial(jax.jit, static_argnames=("output_size",))
def lstm_forward(params, x, *, output_size):
    B, T, Din = x.shape
    Bp_min = _round_up(B, _SUBLANE)
    batch_chunk = min(_BATCH_CHUNK, Bp_min)
    Bp = _round_up(Bp_min, batch_chunk)
    Dp = _round_up(Din, _LANE)
    chunk_len = min(_TIME_CHUNK, T)
    Tpad = _round_up(T, chunk_len)

    # Glue: batch-first -> time-major, pad to lane/sublane-aligned shapes (zeros in the
    # padded hidden/feature lanes never contaminate real lanes because the corresponding
    # weight rows/columns are zero).
    x_t = jnp.transpose(x, (1, 0, 2)).astype(MM_DTYPE)
    x_t = jnp.pad(x_t, ((0, Tpad - T), (0, Bp - B), (0, Dp - Din)))

    h_seq = x_t
    for lp in params["layers"][:-1]:
        h_seq = _lstm_layer_seq(h_seq, lp["w_ih_t"], lp["w_hh_t"], lp["bias"],
                                seq_len=T, chunk_len=chunk_len,
                                batch_chunk=batch_chunk)
    lp = params["layers"][-1]
    out_p = _lstm_layer_last_fc(h_seq, lp["w_ih_t"], lp["w_hh_t"], lp["bias"],
                                params["fc_w_t"], params["fc_b"],
                                seq_len=T, chunk_len=chunk_len,
                                batch_chunk=batch_chunk)
    return out_p[:B, :output_size]


# ----------------------------------------------------------------------------
# Pure-JAX reference (exactly torch.nn.LSTM + Linear semantics, f32)
# ----------------------------------------------------------------------------
def reference_forward(raw, x):
    h_seq = x
    for (w_ih, w_hh, b_ih, b_hh) in raw["layers"]:
        B, T, _ = h_seq.shape
        H = w_hh.shape[1]
        h = jnp.zeros((B, H), jnp.float32)
        c = jnp.zeros((B, H), jnp.float32)
        outs = []
        for t in range(T):
            g = h_seq[:, t, :] @ w_ih.T + h @ w_hh.T + b_ih + b_hh
            i_g, f_g, g_g, o_g = jnp.split(g, 4, axis=-1)
            c = jax.nn.sigmoid(f_g) * c + jax.nn.sigmoid(i_g) * jnp.tanh(g_g)
            h = jax.nn.sigmoid(o_g) * jnp.tanh(c)
            outs.append(h)
        h_seq = jnp.stack(outs, axis=1)
    return h_seq[:, -1, :] @ raw["fc_w"].T + raw["fc_b"]


if __name__ == "__main__":
    # Small shapes consistent with the module's forward.
    B, T = 2, 8
    INPUT_SIZE, HIDDEN_SIZE, NUM_LAYERS, OUTPUT_SIZE = 16, 32, 2, 4

    key = jax.random.PRNGKey(0)
    key, pkey, xkey = jax.random.split(key, 3)
    params, raw = init_params(pkey, INPUT_SIZE, HIDDEN_SIZE, NUM_LAYERS, OUTPUT_SIZE)
    x = jax.random.normal(xkey, (B, T, INPUT_SIZE), jnp.float32)

    y = lstm_forward(params, x, output_size=OUTPUT_SIZE)
    jax.block_until_ready(y)
    assert y.shape == (B, OUTPUT_SIZE)

    # Loose tolerance: kernel uses bf16 matmul operands with f32 accumulation.
    y_ref = reference_forward(raw, x)
    max_err = float(jnp.max(jnp.abs(y - y_ref)))
    assert max_err < 5e-2, f"mismatch vs reference: max|diff|={max_err}"

    print("KERNEL_OK")
</pallas_src>

<mosaic_0001>
module attributes {stable_mosaic.version = 11 : i64} {
  func.func @_lstm_last_fc_kernel(%arg0: i32, %arg1: i32, %arg2: memref<8x16x128xbf16, #tpu.memory_space<vmem>>, %arg3: memref<128x512xbf16, #tpu.memory_space<vmem>>, %arg4: memref<128x512xbf16, #tpu.memory_space<vmem>>, %arg5: memref<1x512xf32, #tpu.memory_space<vmem>>, %arg6: memref<128x128xbf16, #tpu.memory_space<vmem>>, %arg7: memref<1x128xf32, #tpu.memory_space<vmem>>, %arg8: memref<16x128xf32, #tpu.memory_space<vmem>>, %arg9: memref<16x128xf32, #tpu.memory_space<vmem>>, %arg10: memref<16x128xf32, #tpu.memory_space<vmem>>, %arg11: memref<8x16x512xf32, #tpu.memory_space<vmem>>) attributes {dimension_semantics = [#tpu.dimension_semantics<parallel>, #tpu.dimension_semantics<arbitrary>], iteration_bounds = array<i64: 1, 1>, scalar_prefetch = 0 : i64, scratch_operands = 3 : i64, tpu.core_type = #tpu.core_type<tc>, window_params = [{transform_indices = @transform_0, window_bounds = array<i64: 8, 16, 128>}, {pipeline_mode = #tpu.pipeline_mode<synchronous>, transform_indices = @transform_1, window_bounds = array<i64: 128, 512>}, {pipeline_mode = #tpu.pipeline_mode<synchronous>, transform_indices = @transform_2, window_bounds = array<i64: 128, 512>}, {pipeline_mode = #tpu.pipeline_mode<synchronous>, transform_indices = @transform_3, window_bounds = array<i64: 1, 512>}, {pipeline_mode = #tpu.pipeline_mode<synchronous>, transform_indices = @transform_4, window_bounds = array<i64: 128, 128>}, {pipeline_mode = #tpu.pipeline_mode<synchronous>, transform_indices = @transform_5, window_bounds = array<i64: 1, 128>}, {transform_indices = @transform_6, window_bounds = array<i64: 16, 128>}]} {
    %c0_i32 = arith.constant 0 : i32
    %0 = arith.cmpi eq, %arg1, %c0_i32 : i32
    %1 = arith.extui %0 : i1 to i32
    %c0_i32_0 = arith.constant 0 : i32
    %2 = arith.cmpi ne, %1, %c0_i32_0 : i32
    scf.if %2 {
      %cst_25 = arith.constant 0.000000e+00 : f32
      %26 = vector.broadcast %cst_25 : f32 to vector<16x128xf32>
      %c0_26 = arith.constant 0 : index
      %c0_27 = arith.constant 0 : index
      %27 = vector.load %arg9[%c0_26, %c0_27] : memref<16x128xf32, #tpu.memory_space<vmem>>, vector<16x128xf32>
      tpu.vector_store %arg9[%c0_26, %c0_27], %26 {strides = array<i32>} : memref<16x128xf32, #tpu.memory_space<vmem>>, vector<16x128xf32>,
      %cst_28 = arith.constant 0.000000e+00 : f32
      %28 = vector.broadcast %cst_28 : f32 to vector<16x128xf32>
      %c0_29 = arith.constant 0 : index
      %c0_30 = arith.constant 0 : index
      %29 = vector.load %arg10[%c0_29, %c0_30] : memref<16x128xf32, #tpu.memory_space<vmem>>, vector<16x128xf32>
      tpu.vector_store %arg10[%c0_29, %c0_30], %28 {strides = array<i32>} : memref<16x128xf32, #tpu.memory_space<vmem>>, vector<16x128xf32>,
    } else {
    }
    %c0 = arith.constant 0 : index
    %c0_1 = arith.constant 0 : index
    %c0_2 = arith.constant 0 : index
    %3 = vector.load %arg2[%c0, %c0_1, %c0_2] : memref<8x16x128xbf16, #tpu.memory_space<vmem>>, vector<8x16x128xbf16>
    %4 = vector.shape_cast %3 : vector<8x16x128xbf16> to vector<128x128xbf16>
    %c0_3 = arith.constant 0 : index
    %c0_4 = arith.constant 0 : index
    %5 = vector.load %arg3[%c0_3, %c0_4] : memref<128x512xbf16, #tpu.memory_space<vmem>>, vector<128x512xbf16>
    %cst = arith.constant dense<0.000000e+00> : vector<128x512xf32>
    %6 = tpu.matmul %4, %5, %cst {dimension_numbers = #tpu.dot_dimension_numbers<[1], [0], [0], [1], [0, 0, 1, 1], [], []>} : vector<128x128xbf16>, vector<128x512xbf16>, vector<128x512xf32> -> vector<128x512xf32>
    %c0_5 = arith.constant 0 : index
    %c0_6 = arith.constant 0 : index
    %7 = vector.load %arg5[%c0_5, %c0_6] : memref<1x512xf32, #tpu.memory_space<vmem>>, vector<1x512xf32>
    %8 = vector.broadcast %7 : vector<1x512xf32> to vector<128x512xf32>
    %9 = arith.addf %6, %8 : vector<128x512xf32>
    %10 = vector.shape_cast %9 : vector<128x512xf32> to vector<8x16x512xf32>
    %c0_7 = arith.constant 0 : index
    %c0_8 = arith.constant 0 : index
    %c0_9 = arith.constant 0 : index
    %11 = vector.load %arg11[%c0_7, %c0_8, %c0_9] : memref<8x16x512xf32, #tpu.memory_space<vmem>>, vector<8x16x512xf32>
    tpu.vector_store %arg11[%c0_7, %c0_8, %c0_9], %10 {strides = array<i32>} : memref<8x16x512xf32, #tpu.memory_space<vmem>>, vector<8x16x512xf32>,
    %c0_10 = arith.constant 0 : index
    %c0_11 = arith.constant 0 : index
    %12 = vector.load %arg4[%c0_10, %c0_11] : memref<128x512xbf16, #tpu.memory_space<vmem>>, vector<128x512xbf16>
    %c8_i32 = arith.constant 8 : i32
    %13 = arith.muli %arg1, %c8_i32 : i32
    %c8_i32_12 = arith.constant 8 : i32
    %14 = arith.subi %c8_i32_12, %13 : i32
    %c8_i32_13 = arith.constant 8 : i32
    %15 = arith.minsi %c8_i32_13, %14 : i32
    %c0_14 = arith.constant 0 : index
    %c0_15 = arith.constant 0 : index
    %16 = vector.load %arg9[%c0_14, %c0_15] : memref<16x128xf32, #tpu.memory_space<vmem>>, vector<16x128xf32>
    %c0_16 = arith.constant 0 : index
    %c0_17 = arith.constant 0 : index
    %17 = vector.load %arg10[%c0_16, %c0_17] : memref<16x128xf32, #tpu.memory_space<vmem>>, vector<16x128xf32>
    %c0_i32_18 = arith.constant 0 : i32
    %18 = arith.subi %15, %c0_i32_18 : i32
    %19 = arith.addi %c0_i32_18, %18 : i32
    %c1_i32 = arith.constant 1 : i32
    %20:2 = scf.for %arg12 = %c0_i32_18 to %19 step %c1_i32 iter_args(%arg13 = %16, %arg14 = %17) -> (vector<16x128xf32>, vector<16x128xf32>)  : i32 {
      %26 = arith.index_cast %arg12 : i32 to index
      %c0_25 = arith.constant 0 : index
      %c0_26 = arith.constant 0 : index
      %27 = vector.load %arg11[%26, %c0_25, %c0_26] : memref<8x16x512xf32, #tpu.memory_space<vmem>>, vector<1x16x512xf32>
      %28 = vector.shape_cast %27 : vector<1x16x512xf32> to vector<16x512xf32>
      %29 = arith.truncf %arg13 : vector<16x128xf32> to vector<16x128xbf16>
      %cst_27 = arith.constant dense<0.000000e+00> : vector<16x512xf32>
      %30 = tpu.matmul %29, %12, %cst_27 {dimension_numbers = #tpu.dot_dimension_numbers<[1], [0], [0], [1], [0, 0, 1, 1], [], []>} : vector<16x128xbf16>, vector<128x512xbf16>, vector<16x512xf32> -> vector<16x512xf32>
      %31 = arith.addf %28, %30 : vector<16x512xf32>
      %32 = vector.extract_strided_slice %31 {offsets = [0, 0], sizes = [16, 128], strides = [1, 1]} : vector<16x512xf32> to vector<16x128xf32>
      %33 = arith.negf %32 : vector<16x128xf32>
      %34 = math.exp %33 : vector<16x128xf32>
      %cst_28 = arith.constant 1.000000e+00 : f32
      %35 = vector.broadcast %cst_28 : f32 to vector<16x128xf32>
      %36 = arith.addf %35, %34 : vector<16x128xf32>
      %37 = arith.divf %35, %36 : vector<16x128xf32>
      %38 = vector.extract_strided_slice %31 {offsets = [0, 128], sizes = [16, 128], strides = [1, 1]} : vector<16x512xf32> to vector<16x128xf32>
      %39 = arith.negf %38 : vector<16x128xf32>
      %40 = math.exp %39 : vector<16x128xf32>
      %cst_29 = arith.constant 1.000000e+00 : f32
      %41 = vector.broadcast %cst_29 : f32 to vector<16x128xf32>
      %42 = arith.addf %41, %40 : vector<16x128xf32>
      %43 = arith.divf %41, %42 : vector<16x128xf32>
      %44 = vector.extract_strided_slice %31 {offsets = [0, 256], sizes = [16, 128], strides = [1, 1]} : vector<16x512xf32> to vector<16x128xf32>
      %45 = math.tanh %44 : vector<16x128xf32>
      %46 = vector.extract_strided_slice %31 {offsets = [0, 384], sizes = [16, 128], strides = [1, 1]} : vector<16x512xf32> to vector<16x128xf32>
      %47 = arith.negf %46 : vector<16x128xf32>
      %48 = math.exp %47 : vector<16x128xf32>
      %cst_30 = arith.constant 1.000000e+00 : f32
      %49 = vector.broadcast %cst_30 : f32 to vector<16x128xf32>
      %50 = arith.addf %49, %48 : vector<16x128xf32>
      %51 = arith.divf %49, %50 : vector<16x128xf32>
      %52 = arith.mulf %43, %arg14 : vector<16x128xf32>
      %53 = arith.mulf %37, %45 : vector<16x128xf32>
      %54 = arith.addf %52, %53 : vector<16x128xf32>
      %55 = math.tanh %54 : vector<16x128xf32>
      %56 = arith.mulf %51, %55 : vector<16x128xf32>
      scf.yield %56, %54 : vector<16x128xf32>, vector<16x128xf32>
    }
    %c0_19 = arith.constant 0 : index
    %c0_20 = arith.constant 0 : index
    %21 = vector.load %arg9[%c0_19, %c0_20] : memref<16x128xf32, #tpu.memory_space<vmem>>, vector<16x128xf32>
    tpu.vector_store %arg9[%c0_19, %c0_20], %20#0 {strides = array<i32>} : memref<16x128xf32, #tpu.memory_space<vmem>>, vector<16x128xf32>,
    %c0_21 = arith.constant 0 : index
    %c0_22 = arith.constant 0 : index
    %22 = vector.load %arg10[%c0_21, %c0_22] : memref<16x128xf32, #tpu.memory_space<vmem>>, vector<16x128xf32>
    tpu.vector_store %arg10[%c0_21, %c0_22], %20#1 {strides = array<i32>} : memref<16x128xf32, #tpu.memory_space<vmem>>, vector<16x128xf32>,
    %c0_i32_23 = arith.constant 0 : i32
    %23 = arith.cmpi eq, %arg1, %c0_i32_23 : i32
    %24 = arith.extui %23 : i1 to i32
    %c0_i32_24 = arith.constant 0 : i32
    %25 = arith.cmpi ne, %24, %c0_i32_24 : i32
    scf.if %25 {
      %26 = arith.truncf %20#0 : vector<16x128xf32> to vector<16x128xbf16>
      %c0_25 = arith.constant 0 : index
      %c0_26 = arith.constant 0 : index
      %27 = vector.load %arg6[%c0_25, %c0_26] : memref<128x128xbf16, #tpu.memory_space<vmem>>, vector<128x128xbf16>
      %cst_27 = arith.constant dense<0.000000e+00> : vector<16x128xf32>
      %28 = tpu.matmul %26, %27, %cst_27 {dimension_numbers = #tpu.dot_dimension_numbers<[1], [0], [0], [1], [0, 0, 1, 1], [], []>} : vector<16x128xbf16>, vector<128x128xbf16>, vector<16x128xf32> -> vector<16x128xf32>
      %c0_28 = arith.constant 0 : index
      %c0_29 = arith.constant 0 : index
      %29 = vector.load %arg7[%c0_28, %c0_29] : memref<1x128xf32, #tpu.memory_space<vmem>>, vector<1x128xf32>
      %30 = vector.broadcast %29 : vector<1x128xf32> to vector<16x128xf32>
      %31 = arith.addf %28, %30 : vector<16x128xf32>
      %c0_30 = arith.constant 0 : index
      %c0_31 = arith.constant 0 : index
      %32 = vector.load %arg8[%c0_30, %c0_31] : memref<16x128xf32, #tpu.memory_space<vmem>>, vector<16x128xf32>
      tpu.vector_store %arg8[%c0_30, %c0_31], %31 {strides = array<i32>} : memref<16x128xf32, #tpu.memory_space<vmem>>, vector<16x128xf32>,
    } else {
    }
    return
  }
  func.func @transform_0(%arg0: i32, %arg1: i32) -> (i32, i32, i32) {
    %c0_i32 = arith.constant 0 : i32
    %c0_i32_0 = arith.constant 0 : i32
    return %arg1, %arg0, %c0_i32 : i32, i32, i32
  }
  func.func @transform_1(%arg0: i32, %arg1: i32) -> (i32, i32) {
    %c0_i32 = arith.constant 0 : i32
    %c0_i32_0 = arith.constant 0 : i32
    %c0_i32_1 = arith.constant 0 : i32
    return %c0_i32, %c0_i32_0 : i32, i32
  }
  func.func @transform_2(%arg0: i32, %arg1: i32) -> (i32, i32) {
    %c0_i32 = arith.constant 0 : i32
    %c0_i32_0 = arith.constant 0 : i32
    %c0_i32_1 = arith.constant 0 : i32
    return %c0_i32, %c0_i32_0 : i32, i32
  }
  func.func @transform_3(%arg0: i32, %arg1: i32) -> (i32, i32) {
    %c0_i32 = arith.constant 0 : i32
    %c0_i32_0 = arith.constant 0 : i32
    %c0_i32_1 = arith.constant 0 : i32
    return %c0_i32, %c0_i32_0 : i32, i32
  }
  func.func @transform_4(%arg0: i32, %arg1: i32) -> (i32, i32) {
    %c0_i32 = arith.constant 0 : i32
    %c0_i32_0 = arith.constant 0 : i32
    %c0_i32_1 = arith.constant 0 : i32
    return %c0_i32, %c0_i32_0 : i32, i32
  }
  func.func @transform_5(%arg0: i32, %arg1: i32) -> (i32, i32) {
    %c0_i32 = arith.constant 0 : i32
    %c0_i32_0 = arith.constant 0 : i32
    %c0_i32_1 = arith.constant 0 : i32
    return %c0_i32, %c0_i32_0 : i32, i32
  }
  func.func @transform_6(%arg0: i32, %arg1: i32) -> (i32, i32) {
    %c0_i32 = arith.constant 0 : i32
    %c0_i32_0 = arith.constant 0 : i32
    return %arg0, %c0_i32 : i32, i32
  }
}

module attributes {stable_mosaic.version = 11 : i64} {
  func.func @_lstm_seq_kernel(%arg0: i32, %arg1: i32, %arg2: memref<8x16x128xbf16, #tpu.memory_space<vmem>>, %arg3: memref<128x512xbf16, #tpu.memory_space<vmem>>, %arg4: memref<128x512xbf16, #tpu.memory_space<vmem>>, %arg5: memref<1x512xf32, #tpu.memory_space<vmem>>, %arg6: memref<8x16x128xbf16, #tpu.memory_space<vmem>>, %arg7: memref<16x128xf32, #tpu.memory_space<vmem>>, %arg8: memref<16x128xf32, #tpu.memory_space<vmem>>, %arg9: memref<8x16x512xf32, #tpu.memory_space<vmem>>) attributes {dimension_semantics = [#tpu.dimension_semantics<parallel>, #tpu.dimension_semantics<arbitrary>], iteration_bounds = array<i64: 1, 1>, scalar_prefetch = 0 : i64, scratch_operands = 3 : i64, tpu.core_type = #tpu.core_type<tc>, window_params = [{transform_indices = @transform_0, window_bounds = array<i64: 8, 16, 128>}, {pipeline_mode = #tpu.pipeline_mode<synchronous>, transform_indices = @transform_1, window_bounds = array<i64: 128, 512>}, {pipeline_mode = #tpu.pipeline_mode<synchronous>, transform_indices = @transform_2, window_bounds = array<i64: 128, 512>}, {pipeline_mode = #tpu.pipeline_mode<synchronous>, transform_indices = @transform_3, window_bounds = array<i64: 1, 512>}, {transform_indices = @transform_4, window_bounds = array<i64: 8, 16, 128>}]} {
    %c0_i32 = arith.constant 0 : i32
    %0 = arith.cmpi eq, %arg1, %c0_i32 : i32
    %1 = arith.extui %0 : i1 to i32
    %c0_i32_0 = arith.constant 0 : i32
    %2 = arith.cmpi ne, %1, %c0_i32_0 : i32
    scf.if %2 {
      %cst_23 = arith.constant 0.000000e+00 : f32
      %23 = vector.broadcast %cst_23 : f32 to vector<16x128xf32>
      %c0_24 = arith.constant 0 : index
      %c0_25 = arith.constant 0 : index
      %24 = vector.load %arg7[%c0_24, %c0_25] : memref<16x128xf32, #tpu.memory_space<vmem>>, vector<16x128xf32>
      tpu.vector_store %arg7[%c0_24, %c0_25], %23 {strides = array<i32>} : memref<16x128xf32, #tpu.memory_space<vmem>>, vector<16x128xf32>,
      %cst_26 = arith.constant 0.000000e+00 : f32
      %25 = vector.broadcast %cst_26 : f32 to vector<16x128xf32>
      %c0_27 = arith.constant 0 : index
      %c0_28 = arith.constant 0 : index
      %26 = vector.load %arg8[%c0_27, %c0_28] : memref<16x128xf32, #tpu.memory_space<vmem>>, vector<16x128xf32>
      tpu.vector_store %arg8[%c0_27, %c0_28], %25 {strides = array<i32>} : memref<16x128xf32, #tpu.memory_space<vmem>>, vector<16x128xf32>,
    } else {
    }
    %c0 = arith.constant 0 : index
    %c0_1 = arith.constant 0 : index
    %c0_2 = arith.constant 0 : index
    %3 = vector.load %arg2[%c0, %c0_1, %c0_2] : memref<8x16x128xbf16, #tpu.memory_space<vmem>>, vector<8x16x128xbf16>
    %4 = vector.shape_cast %3 : vector<8x16x128xbf16> to vector<128x128xbf16>
    %c0_3 = arith.constant 0 : index
    %c0_4 = arith.constant 0 : index
    %5 = vector.load %arg3[%c0_3, %c0_4] : memref<128x512xbf16, #tpu.memory_space<vmem>>, vector<128x512xbf16>
    %cst = arith.constant dense<0.000000e+00> : vector<128x512xf32>
    %6 = tpu.matmul %4, %5, %cst {dimension_numbers = #tpu.dot_dimension_numbers<[1], [0], [0], [1], [0, 0, 1, 1], [], []>} : vector<128x128xbf16>, vector<128x512xbf16>, vector<128x512xf32> -> vector<128x512xf32>
    %c0_5 = arith.constant 0 : index
    %c0_6 = arith.constant 0 : index
    %7 = vector.load %arg5[%c0_5, %c0_6] : memref<1x512xf32, #tpu.memory_space<vmem>>, vector<1x512xf32>
    %8 = vector.broadcast %7 : vector<1x512xf32> to vector<128x512xf32>
    %9 = arith.addf %6, %8 : vector<128x512xf32>
    %10 = vector.shape_cast %9 : vector<128x512xf32> to vector<8x16x512xf32>
    %c0_7 = arith.constant 0 : index
    %c0_8 = arith.constant 0 : index
    %c0_9 = arith.constant 0 : index
    %11 = vector.load %arg9[%c0_7, %c0_8, %c0_9] : memref<8x16x512xf32, #tpu.memory_space<vmem>>, vector<8x16x512xf32>
    tpu.vector_store %arg9[%c0_7, %c0_8, %c0_9], %10 {strides = array<i32>} : memref<8x16x512xf32, #tpu.memory_space<vmem>>, vector<8x16x512xf32>,
    %c0_10 = arith.constant 0 : index
    %c0_11 = arith.constant 0 : index
    %12 = vector.load %arg4[%c0_10, %c0_11] : memref<128x512xbf16, #tpu.memory_space<vmem>>, vector<128x512xbf16>
    %c8_i32 = arith.constant 8 : i32
    %13 = arith.muli %arg1, %c8_i32 : i32
    %c8_i32_12 = arith.constant 8 : i32
    %14 = arith.subi %c8_i32_12, %13 : i32
    %c8_i32_13 = arith.constant 8 : i32
    %15 = arith.minsi %c8_i32_13, %14 : i32
    %c0_14 = arith.constant 0 : index
    %c0_15 = arith.constant 0 : index
    %16 = vector.load %arg7[%c0_14, %c0_15] : memref<16x128xf32, #tpu.memory_space<vmem>>, vector<16x128xf32>
    %c0_16 = arith.constant 0 : index
    %c0_17 = arith.constant 0 : index
    %17 = vector.load %arg8[%c0_16, %c0_17] : memref<16x128xf32, #tpu.memory_space<vmem>>, vector<16x128xf32>
    %c0_i32_18 = arith.constant 0 : i32
    %18 = arith.subi %15, %c0_i32_18 : i32
    %19 = arith.addi %c0_i32_18, %18 : i32
    %c1_i32 = arith.constant 1 : i32
    %20:2 = scf.for %arg10 = %c0_i32_18 to %19 step %c1_i32 iter_args(%arg11 = %16, %arg12 = %17) -> (vector<16x128xf32>, vector<16x128xf32>)  : i32 {
      %23 = arith.index_cast %arg10 : i32 to index
      %c0_23 = arith.constant 0 : index
      %c0_24 = arith.constant 0 : index
      %24 = vector.load %arg9[%23, %c0_23, %c0_24] : memref<8x16x512xf32, #tpu.memory_space<vmem>>, vector<1x16x512xf32>
      %25 = vector.shape_cast %24 : vector<1x16x512xf32> to vector<16x512xf32>
      %26 = arith.truncf %arg11 : vector<16x128xf32> to vector<16x128xbf16>
      %cst_25 = arith.constant dense<0.000000e+00> : vector<16x512xf32>
      %27 = tpu.matmul %26, %12, %cst_25 {dimension_numbers = #tpu.dot_dimension_numbers<[1], [0], [0], [1], [0, 0, 1, 1], [], []>} : vector<16x128xbf16>, vector<128x512xbf16>, vector<16x512xf32> -> vector<16x512xf32>
      %28 = arith.addf %25, %27 : vector<16x512xf32>
      %29 = vector.extract_strided_slice %28 {offsets = [0, 0], sizes = [16, 128], strides = [1, 1]} : vector<16x512xf32> to vector<16x128xf32>
      %30 = arith.negf %29 : vector<16x128xf32>
      %31 = math.exp %30 : vector<16x128xf32>
      %cst_26 = arith.constant 1.000000e+00 : f32
      %32 = vector.broadcast %cst_26 : f32 to vector<16x128xf32>
      %33 = arith.addf %32, %31 : vector<16x128xf32>
      %34 = arith.divf %32, %33 : vector<16x128xf32>
      %35 = vector.extract_strided_slice %28 {offsets = [0, 128], sizes = [16, 128], strides = [1, 1]} : vector<16x512xf32> to vector<16x128xf32>
      %36 = arith.negf %35 : vector<16x128xf32>
      %37 = math.exp %36 : vector<16x128xf32>
      %cst_27 = arith.constant 1.000000e+00 : f32
      %38 = vector.broadcast %cst_27 : f32 to vector<16x128xf32>
      %39 = arith.addf %38, %37 : vector<16x128xf32>
      %40 = arith.divf %38, %39 : vector<16x128xf32>
      %41 = vector.extract_strided_slice %28 {offsets = [0, 256], sizes = [16, 128], strides = [1, 1]} : vector<16x512xf32> to vector<16x128xf32>
      %42 = math.tanh %41 : vector<16x128xf32>
      %43 = vector.extract_strided_slice %28 {offsets = [0, 384], sizes = [16, 128], strides = [1, 1]} : vector<16x512xf32> to vector<16x128xf32>
      %44 = arith.negf %43 : vector<16x128xf32>
      %45 = math.exp %44 : vector<16x128xf32>
      %cst_28 = arith.constant 1.000000e+00 : f32
      %46 = vector.broadcast %cst_28 : f32 to vector<16x128xf32>
      %47 = arith.addf %46, %45 : vector<16x128xf32>
      %48 = arith.divf %46, %47 : vector<16x128xf32>
      %49 = arith.mulf %40, %arg12 : vector<16x128xf32>
      %50 = arith.mulf %34, %42 : vector<16x128xf32>
      %51 = arith.addf %49, %50 : vector<16x128xf32>
      %52 = math.tanh %51 : vector<16x128xf32>
      %53 = arith.mulf %48, %52 : vector<16x128xf32>
      %54 = arith.truncf %53 : vector<16x128xf32> to vector<16x128xbf16>
      %55 = arith.index_cast %arg10 : i32 to index
      %c0_29 = arith.constant 0 : index
      %c0_30 = arith.constant 0 : index
      %56 = vector.load %arg6[%55, %c0_29, %c0_30] : memref<8x16x128xbf16, #tpu.memory_space<vmem>>, vector<1x16x128xbf16>
      %57 = vector.shape_cast %56 : vector<1x16x128xbf16> to vector<16x128xbf16>
      %58 = vector.shape_cast %54 : vector<16x128xbf16> to vector<1x16x128xbf16>
      tpu.vector_store %arg6[%55, %c0_29, %c0_30], %58 {strides = array<i32>} : memref<8x16x128xbf16, #tpu.memory_space<vmem>>, vector<1x16x128xbf16>,
      scf.yield %53, %51 : vector<16x128xf32>, vector<16x128xf32>
    }
    %c0_19 = arith.constant 0 : index
    %c0_20 = arith.constant 0 : index
    %21 = vector.load %arg7[%c0_19, %c0_20] : memref<16x128xf32, #tpu.memory_space<vmem>>, vector<16x128xf32>
    tpu.vector_store %arg7[%c0_19, %c0_20], %20#0 {strides = array<i32>} : memref<16x128xf32, #tpu.memory_space<vmem>>, vector<16x128xf32>,
    %c0_21 = arith.constant 0 : index
    %c0_22 = arith.constant 0 : index
    %22 = vector.load %arg8[%c0_21, %c0_22] : memref<16x128xf32, #tpu.memory_space<vmem>>, vector<16x128xf32>
    tpu.vector_store %arg8[%c0_21, %c0_22], %20#1 {strides = array<i32>} : memref<16x128xf32, #tpu.memory_space<vmem>>, vector<16x128xf32>,
    return
  }
  func.func @transform_0(%arg0: i32, %arg1: i32) -> (i32, i32, i32) {
    %c0_i32 = arith.constant 0 : i32
    %c0_i32_0 = arith.constant 0 : i32
    return %arg1, %arg0, %c0_i32 : i32, i32, i32
  }
  func.func @transform_1(%arg0: i32, %arg1: i32) -> (i32, i32) {
    %c0_i32 = arith.constant 0 : i32
    %c0_i32_0 = arith.constant 0 : i32
    %c0_i32_1 = arith.constant 0 : i32
    return %c0_i32, %c0_i32_0 : i32, i32
  }
  func.func @transform_2(%arg0: i32, %arg1: i32) -> (i32, i32) {
    %c0_i32 = arith.constant 0 : i32
    %c0_i32_0 = arith.constant 0 : i32
    %c0_i32_1 = arith.constant 0 : i32
    return %c0_i32, %c0_i32_0 : i32, i32
  }
  func.func @transform_3(%arg0: i32, %arg1: i32) -> (i32, i32) {
    %c0_i32 = arith.constant 0 : i32
    %c0_i32_0 = arith.constant 0 : i32
    %c0_i32_1 = arith.constant 0 : i32
    return %c0_i32, %c0_i32_0 : i32, i32
  }
  func.func @transform_4(%arg0: i32, %arg1: i32) -> (i32, i32, i32) {
    %c0_i32 = arith.constant 0 : i32
    %c0_i32_0 = arith.constant 0 : i32
    return %arg1, %arg0, %c0_i32 : i32, i32, i32
  }
}

</mosaic_0001>

<llo_original>
// kernel: lstm_forward.2
$region0: #{lstm_forward.2}
  #allocation0 [shape = 'u32[]', space=smem, size = 0x4, offset = 0x4, fixed_abs, tag = 'smem constant byte address 0x4 - core index']
  #allocation1 [shape = 'u32[144,128]{1,0:T(1,128)}', space=vmem, size = 0x12000, scoped, tag = 'internal scratch']
  #allocation2 [shape = 'f32[16,128]{1,0:T(8,128)}', space=vmem, size = 0x2000, scoped, tag = 'scratch operand']
  #allocation3 [shape = 'f32[16,128]{1,0:T(8,128)}', space=vmem, size = 0x2000, scoped, tag = 'scratch operand']
  #allocation4 [shape = 'f32[8,16,512]{2,1,0:T(8,128)}', space=vmem, size = 0x40000, scoped, tag = 'scratch operand']
  %s0 = inlined_call_operand.vmem [shape: bf16[8,16,128], index: 0, kind: input, shape index: {}]
  %s1 = inlined_call_operand.hbm [shape: bf16[128,512], index: 1, kind: input, shape index: {}]
  %s2 = inlined_call_operand.hbm [shape: bf16[128,512], index: 2, kind: input, shape index: {}]
  %s3 = inlined_call_operand.vmem [shape: f32[1,512], index: 3, kind: input, shape index: {}]
  %s4 = inlined_call_operand.vmem [shape: bf16[8,16,128], index: 4, kind: output, shape index: {}]
  %s5 = sld [smem:[#allocation0]]
  $region45: #{lstm_forward.2} parent=0
    _
  %s7 = ssub.s32 1, %s5
  %s8 = scalar_select 0, %s7, %s5
  $region1: #{lstm_forward.2} parent=0
    #allocation5 [shape = 'u8[131072]{0}', space=vmem, size = 0x20000, scoped, tag = 'input window, operand 1, single buffered']
    #allocation6 [shape = 's32[1]{0}', space=sflag, size = 0x4, scoped, tag = 'scoped memory for lstm_forward.2']
    #allocation7 [shape = 'u8[131072]{0}', space=vmem, size = 0x20000, scoped, tag = 'input window, operand 2, single buffered']
    #allocation8 [shape = 's32[1]{0}', space=sflag, size = 0x4, scoped, tag = 'scoped memory for lstm_forward.2']
    %9 = vsyncpa [#allocation6], 0
    %10 = vsyncpa [#allocation8], 0
    // Predicated region
    $region2: #{lstm_forward.2} parent=1 // pred_check
      _
    $region3: #{lstm_forward.2} parent=1 // pred_check_branch
      %12 = sbr.rel (0) target = $region5
    $region4: #{lstm_forward.2} parent=1 // pred_region
      _
    $region5: #{lstm_forward.2} parent=1 // pred_fallthru
      _
    // Predicated region
    $region6: #{lstm_forward.2} parent=1 // pred_check
      _
    $region7: #{lstm_forward.2} parent=1 // pred_check_branch
      %14 = sbr.rel (0) target = $region9
    $region8: #{lstm_forward.2} parent=1 // pred_region
      %s16 = ssub.s32 4096, 4096
      %17 = vsyncadd [#allocation6], %s16
      %s18 = sshll.u32 [#allocation5], 4
      %s19 = int_to_ptr.vmem [resolvable:$true] %s18
      %24 = dma.hbm_to_vmem [thread:$0]  %s1, 4096, %s19, [#allocation6], 256, 256, 16
    $region9: #{lstm_forward.2} parent=1 // pred_fallthru
      _
    // Predicated region
    $region10: #{lstm_forward.2} parent=1 // pred_check
      _
    $region11: #{lstm_forward.2} parent=1 // pred_check_branch
      %26 = sbr.rel (0) target = $region13
    $region12: #{lstm_forward.2} parent=1 // pred_region
      %s28 = ssub.s32 4096, 4096
      %29 = vsyncadd [#allocation8], %s28
      %s30 = sshll.u32 [#allocation7], 4
      %s31 = int_to_ptr.vmem [resolvable:$true] %s30
      %36 = dma.hbm_to_vmem [thread:$0]  %s2, 4096, %s31, [#allocation8], 256, 256, 16
    $region13: #{lstm_forward.2} parent=1 // pred_fallthru
      _
    // Predicated region
    $region14: #{lstm_forward.2} parent=1 // pred_check
      _
    $region15: #{lstm_forward.2} parent=1 // pred_check_branch
      %38 = sbr.rel (0) target = $region17
    $region16: #{lstm_forward.2} parent=1 // pred_region
      _
    $region17: #{lstm_forward.2} parent=1 // pred_fallthru
      _
    // Predicated region
    $region18: #{lstm_forward.2} parent=1 // pred_check
      _
    $region19: #{lstm_forward.2} parent=1 // pred_check_branch
      %40 = sbr.rel (0) target = $region21
    $region20: #{lstm_forward.2} parent=1 // pred_region
      %41 = dma.done [#allocation6], 4096
    $region21: #{lstm_forward.2} parent=1 // pred_fallthru
      _
    // Predicated region
    $region22: #{lstm_forward.2} parent=1 // pred_check
      _
    $region23: #{lstm_forward.2} parent=1 // pred_check_branch
      %43 = sbr.rel (0) target = $region25
    $region24: #{lstm_forward.2} parent=1 // pred_region
      %44 = dma.done [#allocation8], 4096
    $region25: #{lstm_forward.2} parent=1 // pred_fallthru
      _
    %p46 = scmp.eq.s32.totalorder 0, 0
    // Predicated region
    $region26: #{lstm_forward.2} parent=1 // pred_check
      %p47 = pneg %p46
    $region27: #{lstm_forward.2} parent=1 // pred_check_branch
      %49 = sbr.rel (%p47) target = $region29
    $region28: #{lstm_forward.2} parent=1 // pred_region
      %50 = vst [vmem:[#allocation2] sm:$0xff] 0.0
      %51 = vst [vmem:[#allocation2 + $0x8] sm:$0xff] 0.0
      %52 = vst [vmem:[#allocation3] sm:$0xff] 0.0
      %53 = vst [vmem:[#allocation3 + $0x8] sm:$0xff] 0.0
    $region29: #{lstm_forward.2} parent=1 // pred_fallthru
      _
    %v54 = vld [vmem:[%s0] sm:$0xf]
    %v55 = vld [vmem:[%s0 + $0x4] sm:$0xf]
    %v56 = vld [vmem:[%s0 + $0x8] sm:$0xf]
    %v57 = vld [vmem:[%s0 + $0xc] sm:$0xf]
    %v58 = vld [vmem:[%s0 + $0x10] sm:$0xf]
    %v59 = vld [vmem:[%s0 + $0x14] sm:$0xf]
    %v60 = vld [vmem:[%s0 + $0x18] sm:$0xf]
    %v61 = vld [vmem:[%s0 + $0x1c] sm:$0xf]
    %v62 = vld [vmem:[%s0 + $0x20] sm:$0xf]
    %v63 = vld [vmem:[%s0 + $0x24] sm:$0xf]
    %v64 = vld [vmem:[%s0 + $0x28] sm:$0xf]
    %v65 = vld [vmem:[%s0 + $0x2c] sm:$0xf]
    %v66 = vld [vmem:[%s0 + $0x30] sm:$0xf]
    %v67 = vld [vmem:[%s0 + $0x34] sm:$0xf]
    %v68 = vld [vmem:[%s0 + $0x38] sm:$0xf]
    %v69 = vld [vmem:[%s0 + $0x3c] sm:$0xf]
    %v70 = vld [vmem:[#allocation5] sm:$0xff]
    %v71 = vld [vmem:[#allocation5 + $0x8] sm:$0xff]
    %v72 = vld [vmem:[#allocation5 + $0x10] sm:$0xff]
    %v73 = vld [vmem:[#allocation5 + $0x18] sm:$0xff]
    %v74 = vld [vmem:[#allocation5 + $0x20] sm:$0xff]
    %v75 = vld [vmem:[#allocation5 + $0x28] sm:$0xff]
    %v76 = vld [vmem:[#allocation5 + $0x30] sm:$0xff]
    %v77 = vld [vmem:[#allocation5 + $0x38] sm:$0xff]
    %v78 = vld [vmem:[#allocation5 + $0x40] sm:$0xff]
    %v79 = vld [vmem:[#allocation5 + $0x48] sm:$0xff]
    %v80 = vld [vmem:[#allocation5 + $0x50] sm:$0xff]
    %v81 = vld [vmem:[#allocation5 + $0x58] sm:$0xff]
    %v82 = vld [vmem:[#allocation5 + $0x60] sm:$0xff]
    %v83 = vld [vmem:[#allocation5 + $0x68] sm:$0xff]
    %v84 = vld [vmem:[#allocation5 + $0x70] sm:$0xff]
    %v85 = vld [vmem:[#allocation5 + $0x78] sm:$0xff]
    %v86 = vld [vmem:[#allocation5 + $0x80] sm:$0xff]
    %v87 = vld [vmem:[#allocation5 + $0x88] sm:$0xff]
    %v88 = vld [vmem:[#allocation5 + $0x90] sm:$0xff]
    %v89 = vld [vmem:[#allocation5 + $0x98] sm:$0xff]
    %v90 = vld [vmem:[#allocation5 + $0xa0] sm:$0xff]
    %v91 = vld [vmem:[#allocation5 + $0xa8] sm:$0xff]
    %v92 = vld [vmem:[#allocation5 + $0xb0] sm:$0xff]
    %v93 = vld [vmem:[#allocation5 + $0xb8] sm:$0xff]
    %v94 = vld [vmem:[#allocation5 + $0xc0] sm:$0xff]
    %v95 = vld [vmem:[#allocation5 + $0xc8] sm:$0xff]
    %v96 = vld [vmem:[#allocation5 + $0xd0] sm:$0xff]
    %v97 = vld [vmem:[#allocation5 + $0xd8] sm:$0xff]
    %v98 = vld [vmem:[#allocation5 + $0xe0] sm:$0xff]
    %v99 = vld [vmem:[#allocation5 + $0xe8] sm:$0xff]
    %v100 = vld [vmem:[#allocation5 + $0xf0] sm:$0xff]
    %v101 = vld [vmem:[#allocation5 + $0xf8] sm:$0xff]
    %v102 = vld [vmem:[%s3] sm:$0xf]
    %v104 = vlaneseq
    %v105 = vshrl.u32 %v104, 7
    %v106 = vsub.s32 0, %v105
    %v107 = vrot.slane %v102, %v106
    %v108 = vlaneseq
    %v109 = vshrl.u32 %v108, 7
    %v110 = vsub.s32 1, %v109
    %v111 = vrot.slane %v102, %v110
    %v112 = vlaneseq
    %v113 = vshrl.u32 %v112, 7
    %v114 = vsub.s32 2, %v113
    %v115 = vrot.slane %v102, %v114
    %v116 = vlaneseq
    %v117 = vshrl.u32 %v116, 7
    %v118 = vsub.s32 3, %v117
    %v119 = vrot.slane %v102, %v118
    %v140 = vunpack.c.l.b16 %v54
    %v141 = vunpack.c.l.b16 %v55
    %v142 = vunpack.c.l.b16 %v56
    %v143 = vunpack.c.l.b16 %v57
    %v144 = vunpack.c.l.b16 %v58
    %v145 = vunpack.c.l.b16 %v59
    %v146 = vunpack.c.l.b16 %v60
    %v147 = vunpack.c.l.b16 %v61
    %v148 = vunpack.c.l.b16 %v62
    %v149 = vunpack.c.l.b16 %v63
    %v150 = vunpack.c.l.b16 %v64
    %v151 = vunpack.c.l.b16 %v65
    %v152 = vunpack.c.l.b16 %v66
    %v153 = vunpack.c.l.b16 %v67
    %v154 = vunpack.c.l.b16 %v68
    %v155 = vunpack.c.l.b16 %v69
    %v156 = vpack.c.b16 %v141, %v140
    %v157 = vpack.c.b16 %v143, %v142
    %v158 = vpack.c.b16 %v145, %v144
    %v159 = vpack.c.b16 %v147, %v146
    %v160 = vpack.c.b16 %v149, %v148
    %v161 = vpack.c.b16 %v151, %v150
    %v162 = vpack.c.b16 %v153, %v152
    %v163 = vpack.c.b16 %v155, %v154
    %v204 = vunpack.c.l.b16 %v70
    %v205 = vunpack.c.h.b16 %v70
    %v206 = vunpack.c.l.b16 %v71
    %v207 = vunpack.c.h.b16 %v71
    %v208 = vunpack.c.l.b16 %v72
    %v209 = vunpack.c.h.b16 %v72
    %v210 = vunpack.c.l.b16 %v73
    %v211 = vunpack.c.h.b16 %v73
    %v212 = vunpack.c.l.b16 %v74
    %v213 = vunpack.c.h.b16 %v74
    %v214 = vunpack.c.l.b16 %v75
    %v215 = vunpack.c.h.b16 %v75
    %v216 = vunpack.c.l.b16 %v76
    %v217 = vunpack.c.h.b16 %v76
    %v218 = vunpack.c.l.b16 %v77
    %v219 = vunpack.c.h.b16 %v77
    %v220 = vunpack.c.l.b16 %v78
    %v221 = vunpack.c.h.b16 %v78
    %v222 = vunpack.c.l.b16 %v79
    %v223 = vunpack.c.h.b16 %v79
    %v224 = vunpack.c.l.b16 %v80
    %v225 = vunpack.c.h.b16 %v80
    %v226 = vunpack.c.l.b16 %v81
    %v227 = vunpack.c.h.b16 %v81
    %v228 = vunpack.c.l.b16 %v82
    %v229 = vunpack.c.h.b16 %v82
    %v230 = vunpack.c.l.b16 %v83
    %v231 = vunpack.c.h.b16 %v83
    %v232 = vunpack.c.l.b16 %v84
    %v233 = vunpack.c.h.b16 %v84
    %v234 = vunpack.c.l.b16 %v85
    %v235 = vunpack.c.h.b16 %v85
    %v236 = vunpack.c.l.b16 %v86
    %v237 = vunpack.c.h.b16 %v86
    %v238 = vunpack.c.l.b16 %v87
    %v239 = vunpack.c.h.b16 %v87
    %v240 = vunpack.c.l.b16 %v88
    %v241 = vunpack.c.h.b16 %v88
    %v242 = vunpack.c.l.b16 %v89
    %v243 = vunpack.c.h.b16 %v89
    %v244 = vunpack.c.l.b16 %v90
    %v245 = vunpack.c.h.b16 %v90
    %v246 = vunpack.c.l.b16 %v91
    %v247 = vunpack.c.h.b16 %v91
    %v248 = vunpack.c.l.b16 %v92
    %v249 = vunpack.c.h.b16 %v92
    %v250 = vunpack.c.l.b16 %v93
    %v251 = vunpack.c.h.b16 %v93
    %v252 = vunpack.c.l.b16 %v94
    %v253 = vunpack.c.h.b16 %v94
    %v254 = vunpack.c.l.b16 %v95
    %v255 = vunpack.c.h.b16 %v95
    %v256 = vunpack.c.l.b16 %v96
    %v257 = vunpack.c.h.b16 %v96
    %v258 = vunpack.c.l.b16 %v97
    %v259 = vunpack.c.h.b16 %v97
    %v260 = vunpack.c.l.b16 %v98
    %v261 = vunpack.c.h.b16 %v98
    %v262 = vunpack.c.l.b16 %v99
    %v263 = vunpack.c.h.b16 %v99
    %v264 = vunpack.c.l.b16 %v100
    %v265 = vunpack.c.h.b16 %v100
    %v266 = vunpack.c.l.b16 %v101
    %v267 = vunpack.c.h.b16 %v101
    %v268 = vpack.c.b16 %v208, %v204
    %v269 = vpack.c.b16 %v209, %v205
    %v270 = vpack.c.b16 %v210, %v206
    %v271 = vpack.c.b16 %v211, %v207
    %v272 = vpack.c.b16 %v216, %v212
    %v273 = vpack.c.b16 %v217, %v213
    %v274 = vpack.c.b16 %v218, %v214
    %v275 = vpack.c.b16 %v219, %v215
    %v276 = vpack.c.b16 %v224, %v220
    %v277 = vpack.c.b16 %v225, %v221
    %v278 = vpack.c.b16 %v226, %v222
    %v279 = vpack.c.b16 %v227, %v223
    %v280 = vpack.c.b16 %v232, %v228
    %v281 = vpack.c.b16 %v233, %v229
    %v282 = vpack.c.b16 %v234, %v230
    %v283 = vpack.c.b16 %v235, %v231
    %v284 = vpack.c.b16 %v240, %v236
    %v285 = vpack.c.b16 %v241, %v237
    %v286 = vpack.c.b16 %v242, %v238
    %v287 = vpack.c.b16 %v243, %v239
    %v288 = vpack.c.b16 %v248, %v244
    %v289 = vpack.c.b16 %v249, %v245
    %v290 = vpack.c.b16 %v250, %v246
    %v291 = vpack.c.b16 %v251, %v247
    %v292 = vpack.c.b16 %v256, %v252
    %v293 = vpack.c.b16 %v257, %v253
    %v294 = vpack.c.b16 %v258, %v254
    %v295 = vpack.c.b16 %v259, %v255
    %v296 = vpack.c.b16 %v264, %v260
    %v297 = vpack.c.b16 %v265, %v261
    %v298 = vpack.c.b16 %v266, %v262
    %v299 = vpack.c.b16 %v267, %v263
    %332 = vmatprep.subr.bf16.mxu0 %v269
    %333 = vmatpush1.bf16.msra.mxu0 %v268
    %334 = vmatprep.subr.bf16.mxu0 %v273
    %335 = vmatpush1.bf16.msra.mxu0 %v272
    %336 = vmatprep.subr.bf16.mxu0 %v277
    %337 = vmatpush1.bf16.msra.mxu0 %v276
    %338 = vmatprep.subr.bf16.mxu0 %v281
    %339 = vmatpush1.bf16.msra.mxu0 %v280
    %340 = vmatprep.subr.bf16.mxu0 %v285
    %341 = vmatpush1.bf16.msra.mxu0 %v284
    %342 = vmatprep.subr.bf16.mxu0 %v289
    %343 = vmatpush1.bf16.msra.mxu0 %v288
    %344 = vmatprep.subr.bf16.mxu0 %v293
    %345 = vmatpush1.bf16.msra.mxu0 %v292
    %346 = vmatprep.subr.bf16.mxu0 %v297
    %347 = vmatpush1.bf16.msra.mxu0 %v296
    %348 = vmatprep.subr.bf16.mxu0 0
    %349 = vmatpush1.bf16.msra.mxu0 0
    %350 = vmatprep.subr.bf16.mxu0 0
    %351 = vmatpush1.bf16.msra.mxu0 0
    %352 = vmatprep.subr.bf16.mxu0 0
    %353 = vmatpush1.bf16.msra.mxu0 0
    %354 = vmatprep.subr.bf16.mxu0 0
    %355 = vmatpush1.bf16.msra.mxu0 0
    %356 = vmatprep.subr.bf16.mxu0 0
    %357 = vmatpush1.bf16.msra.mxu0 0
    %358 = vmatprep.subr.bf16.mxu0 0
    %359 = vmatpush1.bf16.msra.mxu0 0
    %360 = vmatprep.subr.bf16.mxu0 0
    %361 = vmatpush1.bf16.msra.mxu0 0
    %362 = vmatprep.subr.bf16.mxu0 0
    %363 = vmatpush1.bf16.msra.mxu0 0
    %364 = vmatprep.mubr.bf16.mxu0 0
    %365 = vmatmul.mubr.bf16.gmra.mrb[0].mxu0 %v156
    %v366 = vpop.f32.mrb[0].mxu0
    %v367 = vadd.f32 %v107, %v366
    %v368 = vpop.f32.mrb[0].mxu0
    %v369 = vadd.f32 %v111, %v368
    %v370 = vpop.f32.mrb[0].mxu0
    %v371 = vadd.f32 %v107, %v370
    %v372 = vpop.f32.mrb[0].mxu0
    %v373 = vadd.f32 %v111, %v372
    %374 = vmatprep.mubr.bf16.mxu0 0
    %375 = vmatmul.mubr.bf16.gmra.mrb[0].mxu0 %v157
    %v376 = vpop.f32.mrb[0].mxu0
    %v377 = vadd.f32 %v107, %v376
    %v378 = vpop.f32.mrb[0].mxu0
    %v379 = vadd.f32 %v111, %v378
    %v380 = vpop.f32.mrb[0].mxu0
    %v381 = vadd.f32 %v107, %v380
    %v382 = vpop.f32.mrb[0].mxu0
    %v383 = vadd.f32 %v111, %v382
    %384 = vmatprep.mubr.bf16.mxu0 0
    %385 = vmatmul.mubr.bf16.gmra.mrb[0].mxu0 %v158
    %v386 = vpop.f32.mrb[0].mxu0
    %v387 = vadd.f32 %v107, %v386
    %v388 = vpop.f32.mrb[0].mxu0
    %v389 = vadd.f32 %v111, %v388
    %v390 = vpop.f32.mrb[0].mxu0
    %v391 = vadd.f32 %v107, %v390
    %v392 = vpop.f32.mrb[0].mxu0
    %v393 = vadd.f32 %v111, %v392
    %394 = vmatprep.mubr.bf16.mxu0 0
    %395 = vmatmul.mubr.bf16.gmra.mrb[0].mxu0 %v159
    %v396 = vpop.f32.mrb[0].mxu0
    %v397 = vadd.f32 %v107, %v396
    %v398 = vpop.f32.mrb[0].mxu0
    %v399 = vadd.f32 %v111, %v398
    %v400 = vpop.f32.mrb[0].mxu0
    %v401 = vadd.f32 %v107, %v400
    %v402 = vpop.f32.mrb[0].mxu0
    %v403 = vadd.f32 %v111, %v402
    %404 = vmatprep.mubr.bf16.mxu0 0
    %405 = vmatmul.mubr.bf16.gmra.mrb[0].mxu0 %v160
    %v406 = vpop.f32.mrb[0].mxu0
    %v407 = vadd.f32 %v107, %v406
    %v408 = vpop.f32.mrb[0].mxu0
    %v409 = vadd.f32 %v111, %v408
    %v410 = vpop.f32.mrb[0].mxu0
    %v411 = vadd.f32 %v107, %v410
    %v412 = vpop.f32.mrb[0].mxu0
    %v413 = vadd.f32 %v111, %v412
    %414 = vmatprep.mubr.bf16.mxu0 0
    %415 = vmatmul.mubr.bf16.gmra.mrb[0].mxu0 %v161
    %v416 = vpop.f32.mrb[0].mxu0
    %v417 = vadd.f32 %v107, %v416
    %v418 = vpop.f32.mrb[0].mxu0
    %v419 = vadd.f32 %v111, %v418
    %v420 = vpop.f32.mrb[0].mxu0
    %v421 = vadd.f32 %v107, %v420
    %v422 = vpop.f32.mrb[0].mxu0
    %v423 = vadd.f32 %v111, %v422
    %424 = vmatprep.mubr.bf16.mxu0 0
    %425 = vmatmul.mubr.bf16.gmra.mrb[0].mxu0 %v162
    %v426 = vpop.f32.mrb[0].mxu0
    %v427 = vadd.f32 %v107, %v426
    %v428 = vpop.f32.mrb[0].mxu0
    %v429 = vadd.f32 %v111, %v428
    %v430 = vpop.f32.mrb[0].mxu0
    %v431 = vadd.f32 %v107, %v430
    %v432 = vpop.f32.mrb[0].mxu0
    %v433 = vadd.f32 %v111, %v432
    %434 = vmatprep.mubr.bf16.mxu0 0
    %435 = vmatmul.mubr.bf16.gmra.mrb[0].mxu0 %v163
    %v436 = vpop.f32.mrb[0].mxu0
    %v437 = vadd.f32 %v107, %v436
    %v438 = vpop.f32.mrb[0].mxu0
    %v439 = vadd.f32 %v111, %v438
    %v440 = vpop.f32.mrb[0].mxu0
    %v441 = vadd.f32 %v107, %v440
    %v442 = vpop.f32.mrb[0].mxu0
    %v443 = vadd.f32 %v111, %v442
    %444 = vdwg.mxu0
    %445 = vmatprep.subr.bf16.mxu0 %v271
    %446 = vmatpush1.bf16.msra.mxu0 %v270
    %447 = vmatprep.subr.bf16.mxu0 %v275
    %448 = vmatpush1.bf16.msra.mxu0 %v274
    %449 = vmatprep.subr.bf16.mxu0 %v279
    %450 = vmatpush1.bf16.msra.mxu0 %v278
    %451 = vmatprep.subr.bf16.mxu0 %v283
    %452 = vmatpush1.bf16.msra.mxu0 %v282
    %453 = vmatprep.subr.bf16.mxu0 %v287
    %454 = vmatpush1.bf16.msra.mxu0 %v286
    %455 = vmatprep.subr.bf16.mxu0 %v291
    %456 = vmatpush1.bf16.msra.mxu0 %v290
    %457 = vmatprep.subr.bf16.mxu0 %v295
    %458 = vmatpush1.bf16.msra.mxu0 %v294
    %459 = vmatprep.subr.bf16.mxu0 %v299
    %460 = vmatpush1.bf16.msra.mxu0 %v298
    %461 = vmatprep.subr.bf16.mxu0 0
    %462 = vmatpush1.bf16.msra.mxu0 0
    %463 = vmatprep.subr.bf16.mxu0 0
    %464 = vmatpush1.bf16.msra.mxu0 0
    %465 = vmatprep.subr.bf16.mxu0 0
    %466 = vmatpush1.bf16.msra.mxu0 0
    %467 = vmatprep.subr.bf16.mxu0 0
    %468 = vmatpush1.bf16.msra.mxu0 0
    %469 = vmatprep.subr.bf16.mxu0 0
    %470 = vmatpush1.bf16.msra.mxu0 0
    %471 = vmatprep.subr.bf16.mxu0 0
    %472 = vmatpush1.bf16.msra.mxu0 0
    %473 = vmatprep.subr.bf16.mxu0 0
    %474 = vmatpush1.bf16.msra.mxu0 0
    %475 = vmatprep.subr.bf16.mxu0 0
    %476 = vmatpush1.bf16.msra.mxu0 0
    %477 = vmatprep.mubr.bf16.mxu0 0
    %478 = vmatmul.mubr.bf16.gmra.mrb[0].mxu0 %v156
    %v479 = vpop.f32.mrb[0].mxu0
    %v480 = vadd.f32 %v115, %v479
    %v481 = vpop.f32.mrb[0].mxu0
    %v482 = vadd.f32 %v119, %v481
    %v483 = vpop.f32.mrb[0].mxu0
    %v484 = vadd.f32 %v115, %v483
    %v485 = vpop.f32.mrb[0].mxu0
    %v486 = vadd.f32 %v119, %v485
    %487 = vmatprep.mubr.bf16.mxu0 0
    %488 = vmatmul.mubr.bf16.gmra.mrb[0].mxu0 %v157
    %v489 = vpop.f32.mrb[0].mxu0
    %v490 = vadd.f32 %v115, %v489
    %v491 = vpop.f32.mrb[0].mxu0
    %v492 = vadd.f32 %v119, %v491
    %v493 = vpop.f32.mrb[0].mxu0
    %v494 = vadd.f32 %v115, %v493
    %v495 = vpop.f32.mrb[0].mxu0
    %v496 = vadd.f32 %v119, %v495
    %497 = vmatprep.mubr.bf16.mxu0 0
    %498 = vmatmul.mubr.bf16.gmra.mrb[0].mxu0 %v158
    %v499 = vpop.f32.mrb[0].mxu0
    %v500 = vadd.f32 %v115, %v499
    %v501 = vpop.f32.mrb[0].mxu0
    %v502 = vadd.f32 %v119, %v501
    %v503 = vpop.f32.mrb[0].mxu0
    %v504 = vadd.f32 %v115, %v503
    %v505 = vpop.f32.mrb[0].mxu0
    %v506 = vadd.f32 %v119, %v505
    %507 = vmatprep.mubr.bf16.mxu0 0
    %508 = vmatmul.mubr.bf16.gmra.mrb[0].mxu0 %v159
    %v509 = vpop.f32.mrb[0].mxu0
    %v510 = vadd.f32 %v115, %v509
    %v511 = vpop.f32.mrb[0].mxu0
    %v512 = vadd.f32 %v119, %v511
    %v513 = vpop.f32.mrb[0].mxu0
    %v514 = vadd.f32 %v115, %v513
    %v515 = vpop.f32.mrb[0].mxu0
    %v516 = vadd.f32 %v119, %v515
    %517 = vmatprep.mubr.bf16.mxu0 0
    %518 = vmatmul.mubr.bf16.gmra.mrb[0].mxu0 %v160
    %v519 = vpop.f32.mrb[0].mxu0
    %v520 = vadd.f32 %v115, %v519
    %v521 = vpop.f32.mrb[0].mxu0
    %v522 = vadd.f32 %v119, %v521
    %v523 = vpop.f32.mrb[0].mxu0
    %v524 = vadd.f32 %v115, %v523
    %v525 = vpop.f32.mrb[0].mxu0
    %v526 = vadd.f32 %v119, %v525
    %527 = vmatprep.mubr.bf16.mxu0 0
    %528 = vmatmul.mubr.bf16.gmra.mrb[0].mxu0 %v161
    %v529 = vpop.f32.mrb[0].mxu0
    %v530 = vadd.f32 %v115, %v529
    %v531 = vpop.f32.mrb[0].mxu0
    %v532 = vadd.f32 %v119, %v531
    %v533 = vpop.f32.mrb[0].mxu0
    %v534 = vadd.f32 %v115, %v533
    %v535 = vpop.f32.mrb[0].mxu0
    %v536 = vadd.f32 %v119, %v535
    %537 = vmatprep.mubr.bf16.mxu0 0
    %538 = vmatmul.mubr.bf16.gmra.mrb[0].mxu0 %v162
    %v539 = vpop.f32.mrb[0].mxu0
    %v540 = vadd.f32 %v115, %v539
    %v541 = vpop.f32.mrb[0].mxu0
    %v542 = vadd.f32 %v119, %v541
    %v543 = vpop.f32.mrb[0].mxu0
    %v544 = vadd.f32 %v115, %v543
    %v545 = vpop.f32.mrb[0].mxu0
    %v546 = vadd.f32 %v119, %v545
    %547 = vmatprep.mubr.bf16.mxu0 0
    %548 = vmatmul.mubr.bf16.gmra.mrb[0].mxu0 %v163
    %v549 = vpop.f32.mrb[0].mxu0
    %v550 = vadd.f32 %v115, %v549
    %v551 = vpop.f32.mrb[0].mxu0
    %v552 = vadd.f32 %v119, %v551
    %v553 = vpop.f32.mrb[0].mxu0
    %v554 = vadd.f32 %v115, %v553
    %v555 = vpop.f32.mrb[0].mxu0
    %v556 = vadd.f32 %v119, %v555
    %557 = vdwg.mxu0
    %558 = vst [vmem:[#allocation4] sm:$0xff] %v367
    %559 = vst [vmem:[#allocation4 + $0x8] sm:$0xff] %v369
    %560 = vst [vmem:[#allocation4 + $0x10] sm:$0xff] %v480
    %561 = vst [vmem:[#allocation4 + $0x18] sm:$0xff] %v482
    %562 = vst [vmem:[#allocation4 + $0x20] sm:$0xff] %v371
    %563 = vst [vmem:[#allocation4 + $0x28] sm:$0xff] %v373
    %564 = vst [vmem:[#allocation4 + $0x30] sm:$0xff] %v484
    %565 = vst [vmem:[#allocation4 + $0x38] sm:$0xff] %v486
    %566 = vst [vmem:[#allocation4 + $0x40] sm:$0xff] %v377
    %567 = vst [vmem:[#allocation4 + $0x48] sm:$0xff] %v379
    %568 = vst [vmem:[#allocation4 + $0x50] sm:$0xff] %v490
    %569 = vst [vmem:[#allocation4 + $0x58] sm:$0xff] %v492
    %570 = vst [vmem:[#allocation4 + $0x60] sm:$0xff] %v381
    %571 = vst [vmem:[#allocation4 + $0x68] sm:$0xff] %v383
    %572 = vst [vmem:[#allocation4 + $0x70] sm:$0xff] %v494
    %573 = vst [vmem:[#allocation4 + $0x78] sm:$0xff] %v496
    %574 = vst [vmem:[#allocation4 + $0x80] sm:$0xff] %v387
    %575 = vst [vmem:[#allocation4 + $0x88] sm:$0xff] %v389
    %576 = vst [vmem:[#allocation4 + $0x90] sm:$0xff] %v500
    %577 = vst [vmem:[#allocation4 + $0x98] sm:$0xff] %v502
    %578 = vst [vmem:[#allocation4 + $0xa0] sm:$0xff] %v391
    %579 = vst [vmem:[#allocation4 + $0xa8] sm:$0xff] %v393
    %580 = vst [vmem:[#allocation4 + $0xb0] sm:$0xff] %v504
    %581 = vst [vmem:[#allocation4 + $0xb8] sm:$0xff] %v506
    %582 = vst [vmem:[#allocation4 + $0xc0] sm:$0xff] %v397
    %583 = vst [vmem:[#allocation4 + $0xc8] sm:$0xff] %v399
    %584 = vst [vmem:[#allocation4 + $0xd0] sm:$0xff] %v510
    %585 = vst [vmem:[#allocation4 + $0xd8] sm:$0xff] %v512
    %586 = vst [vmem:[#allocation4 + $0xe0] sm:$0xff] %v401
    %587 = vst [vmem:[#allocation4 + $0xe8] sm:$0xff] %v403
    %588 = vst [vmem:[#allocation4 + $0xf0] sm:$0xff] %v514
    %589 = vst [vmem:[#allocation4 + $0xf8] sm:$0xff] %v516
    %590 = vst [vmem:[#allocation4 + $0x100] sm:$0xff] %v407
    %591 = vst [vmem:[#allocation4 + $0x108] sm:$0xff] %v409
    %592 = vst [vmem:[#allocation4 + $0x110] sm:$0xff] %v520
    %593 = vst [vmem:[#allocation4 + $0x118] sm:$0xff] %v522
    %594 = vst [vmem:[#allocation4 + $0x120] sm:$0xff] %v411
    %595 = vst [vmem:[#allocation4 + $0x128] sm:$0xff] %v413
    %596 = vst [vmem:[#allocation4 + $0x130] sm:$0xff] %v524
    %597 = vst [vmem:[#allocation4 + $0x138] sm:$0xff] %v526
    %598 = vst [vmem:[#allocation4 + $0x140] sm:$0xff] %v417
    %599 = vst [vmem:[#allocation4 + $0x148] sm:$0xff] %v419
    %600 = vst [vmem:[#allocation4 + $0x150] sm:$0xff] %v530
    %601 = vst [vmem:[#allocation4 + $0x158] sm:$0xff] %v532
    %602 = vst [vmem:[#allocation4 + $0x160] sm:$0xff] %v421
    %603 = vst [vmem:[#allocation4 + $0x168] sm:$0xff] %v423
    %604 = vst [vmem:[#allocation4 + $0x170] sm:$0xff] %v534
    %605 = vst [vmem:[#allocation4 + $0x178] sm:$0xff] %v536
    %606 = vst [vmem:[#allocation4 + $0x180] sm:$0xff] %v427
    %607 = vst [vmem:[#allocation4 + $0x188] sm:$0xff] %v429
    %608 = vst [vmem:[#allocation4 + $0x190] sm:$0xff] %v540
    %609 = vst [vmem:[#allocation4 + $0x198] sm:$0xff] %v542
    %610 = vst [vmem:[#allocation4 + $0x1a0] sm:$0xff] %v431
    %611 = vst [vmem:[#allocation4 + $0x1a8] sm:$0xff] %v433
    %612 = vst [vmem:[#allocation4 + $0x1b0] sm:$0xff] %v544
    %613 = vst [vmem:[#allocation4 + $0x1b8] sm:$0xff] %v546
    %614 = vst [vmem:[#allocation4 + $0x1c0] sm:$0xff] %v437
    %615 = vst [vmem:[#allocation4 + $0x1c8] sm:$0xff] %v439
    %616 = vst [vmem:[#allocation4 + $0x1d0] sm:$0xff] %v550
    %617 = vst [vmem:[#allocation4 + $0x1d8] sm:$0xff] %v552
    %618 = vst [vmem:[#allocation4 + $0x1e0] sm:$0xff] %v441
    %619 = vst [vmem:[#allocation4 + $0x1e8] sm:$0xff] %v443
    %620 = vst [vmem:[#allocation4 + $0x1f0] sm:$0xff] %v554
    %621 = vst [vmem:[#allocation4 + $0x1f8] sm:$0xff] %v556
    %v622 = vld [vmem:[#allocation7] sm:$0xff]
    %v623 = vld [vmem:[#allocation7 + $0x8] sm:$0xff]
    %v624 = vld [vmem:[#allocation7 + $0x10] sm:$0xff]
    %v625 = vld [vmem:[#allocation7 + $0x18] sm:$0xff]
    %v626 = vld [vmem:[#allocation7 + $0x20] sm:$0xff]
    %v627 = vld [vmem:[#allocation7 + $0x28] sm:$0xff]
    %v628 = vld [vmem:[#allocation7 + $0x30] sm:$0xff]
    %v629 = vld [vmem:[#allocation7 + $0x38] sm:$0xff]
    %v630 = vld [vmem:[#allocation7 + $0x40] sm:$0xff]
    %v631 = vld [vmem:[#allocation7 + $0x48] sm:$0xff]
    %v632 = vld [vmem:[#allocation7 + $0x50] sm:$0xff]
    %v633 = vld [vmem:[#allocation7 + $0x58] sm:$0xff]
    %v634 = vld [vmem:[#allocation7 + $0x60] sm:$0xff]
    %v635 = vld [vmem:[#allocation7 + $0x68] sm:$0xff]
    %v636 = vld [vmem:[#allocation7 + $0x70] sm:$0xff]
    %v637 = vld [vmem:[#allocation7 + $0x78] sm:$0xff]
    %v638 = vld [vmem:[#allocation7 + $0x80] sm:$0xff]
    %v639 = vld [vmem:[#allocation7 + $0x88] sm:$0xff]
    %v640 = vld [vmem:[#allocation7 + $0x90] sm:$0xff]
    %v641 = vld [vmem:[#allocation7 + $0x98] sm:$0xff]
    %v642 = vld [vmem:[#allocation7 + $0xa0] sm:$0xff]
    %v643 = vld [vmem:[#allocation7 + $0xa8] sm:$0xff]
    %v644 = vld [vmem:[#allocation7 + $0xb0] sm:$0xff]
    %v645 = vld [vmem:[#allocation7 + $0xb8] sm:$0xff]
    %v646 = vld [vmem:[#allocation7 + $0xc0] sm:$0xff]
    %v647 = vld [vmem:[#allocation7 + $0xc8] sm:$0xff]
    %v648 = vld [vmem:[#allocation7 + $0xd0] sm:$0xff]
    %v649 = vld [vmem:[#allocation7 + $0xd8] sm:$0xff]
    %v650 = vld [vmem:[#allocation7 + $0xe0] sm:$0xff]
    %v651 = vld [vmem:[#allocation7 + $0xe8] sm:$0xff]
    %v652 = vld [vmem:[#allocation7 + $0xf0] sm:$0xff]
    %v653 = vld [vmem:[#allocation7 + $0xf8] sm:$0xff]
    %s654 = smul.u32 0, 8
    %s655 = ssub.s32 8, %s654
    %p656 = scmp.lt.s32.totalorder %s655, 8
    %s657 = scalar_select %p656, %s655, 8
    %v658 = vld [vmem:[#allocation2] sm:$0xff]
    %v659 = vld [vmem:[#allocation2 + $0x8] sm:$0xff]
    %v660 = vld [vmem:[#allocation3] sm:$0xff]
    %v661 = vld [vmem:[#allocation3 + $0x8] sm:$0xff]
    // While loop
    $region30: #{lstm_forward.2} parent=1 // loop_pre_header
      _
    $region31: #{lstm_forward.2} parent=1 // loop_header
      %s663 = sphi 0, %s665
      %p664 = scmp.ge.s32.totalorder %s663, %s657
      %v668 = vphi %v658, %v984
      %v669 = vphi %v659, %v985
      %v670 = vphi %v660, %v980
      %v671 = vphi %v661, %v981
    $region32: #{lstm_forward.2} parent=1 // loop_header_branch
      %667 = sbr.rel (%p664) target = $region36
    $region33: #{lstm_forward.2} parent=1 // loop_body
      %s672 = smul.u32 %s663, 8
      %s673 = smul.addr %s672, 8
      %s674 = scalar_lea.vmem [#allocation4], %s673
      %v675 = vld [vmem:[%s674] sm:$0xff]
      %v676 = vld [vmem:[%s674 + $0x8] sm:$0xff]
      %v677 = vld [vmem:[%s674 + $0x10] sm:$0xff]
      %v678 = vld [vmem:[%s674 + $0x18] sm:$0xff]
      %v679 = vld [vmem:[%s674 + $0x20] sm:$0xff]
      %v680 = vld [vmem:[%s674 + $0x28] sm:$0xff]
      %v681 = vld [vmem:[%s674 + $0x30] sm:$0xff]
      %v682 = vld [vmem:[%s674 + $0x38] sm:$0xff]
      %v683 = vpack.c.bf16 %v669, %v668
      %v716 = vunpack.c.l.b16 %v622
      %v717 = vunpack.c.h.b16 %v622
      %v718 = vunpack.c.l.b16 %v623
      %v719 = vunpack.c.h.b16 %v623
      %v720 = vunpack.c.l.b16 %v624
      %v721 = vunpack.c.h.b16 %v624
      %v722 = vunpack.c.l.b16 %v625
      %v723 = vunpack.c.h.b16 %v625
      %v724 = vunpack.c.l.b16 %v626
      %v725 = vunpack.c.h.b16 %v626
      %v726 = vunpack.c.l.b16 %v627
      %v727 = vunpack.c.h.b16 %v627
      %v728 = vunpack.c.l.b16 %v628
      %v729 = vunpack.c.h.b16 %v628
      %v730 = vunpack.c.l.b16 %v629
      %v731 = vunpack.c.h.b16 %v629
      %v732 = vunpack.c.l.b16 %v630
      %v733 = vunpack.c.h.b16 %v630
      %v734 = vunpack.c.l.b16 %v631
      %v735 = vunpack.c.h.b16 %v631
      %v736 = vunpack.c.l.b16 %v632
      %v737 = vunpack.c.h.b16 %v632
      %v738 = vunpack.c.l.b16 %v633
      %v739 = vunpack.c.h.b16 %v633
      %v740 = vunpack.c.l.b16 %v634
      %v741 = vunpack.c.h.b16 %v634
      %v742 = vunpack.c.l.b16 %v635
      %v743 = vunpack.c.h.b16 %v635
      %v744 = vunpack.c.l.b16 %v636
      %v745 = vunpack.c.h.b16 %v636
      %v746 = vunpack.c.l.b16 %v637
      %v747 = vunpack.c.h.b16 %v637
      %v748 = vunpack.c.l.b16 %v638
      %v749 = vunpack.c.h.b16 %v638
      %v750 = vunpack.c.l.b16 %v639
      %v751 = vunpack.c.h.b16 %v639
      %v752 = vunpack.c.l.b16 %v640
      %v753 = vunpack.c.h.b16 %v640
      %v754 = vunpack.c.l.b16 %v641
      %v755 = vunpack.c.h.b16 %v641
      %v756 = vunpack.c.l.b16 %v642
      %v757 = vunpack.c.h.b16 %v642
      %v758 = vunpack.c.l.b16 %v643
      %v759 = vunpack.c.h.b16 %v643
      %v760 = vunpack.c.l.b16 %v644
      %v761 = vunpack.c.h.b16 %v644
      %v762 = vunpack.c.l.b16 %v645
      %v763 = vunpack.c.h.b16 %v645
      %v764 = vunpack.c.l.b16 %v646
      %v765 = vunpack.c.h.b16 %v646
      %v766 = vunpack.c.l.b16 %v647
      %v767 = vunpack.c.h.b16 %v647
      %v768 = vunpack.c.l.b16 %v648
      %v769 = vunpack.c.h.b16 %v648
      %v770 = vunpack.c.l.b16 %v649
      %v771 = vunpack.c.h.b16 %v649
      %v772 = vunpack.c.l.b16 %v650
      %v773 = vunpack.c.h.b16 %v650
      %v774 = vunpack.c.l.b16 %v651
      %v775 = vunpack.c.h.b16 %v651
      %v776 = vunpack.c.l.b16 %v652
      %v777 = vunpack.c.h.b16 %v652
      %v778 = vunpack.c.l.b16 %v653
      %v779 = vunpack.c.h.b16 %v653
      %v780 = vpack.c.b16 %v720, %v716
      %v781 = vpack.c.b16 %v721, %v717
      %v782 = vpack.c.b16 %v722, %v718
      %v783 = vpack.c.b16 %v723, %v719
      %v784 = vpack.c.b16 %v728, %v724
      %v785 = vpack.c.b16 %v729, %v725
      %v786 = vpack.c.b16 %v730, %v726
      %v787 = vpack.c.b16 %v731, %v727
      %v788 = vpack.c.b16 %v736, %v732
      %v789 = vpack.c.b16 %v737, %v733
      %v790 = vpack.c.b16 %v738, %v734
      %v791 = vpack.c.b16 %v739, %v735
      %v792 = vpack.c.b16 %v744, %v740
      %v793 = vpack.c.b16 %v745, %v741
      %v794 = vpack.c.b16 %v746, %v742
      %v795 = vpack.c.b16 %v747, %v743
      %v796 = vpack.c.b16 %v752, %v748
      %v797 = vpack.c.b16 %v753, %v749
      %v798 = vpack.c.b16 %v754, %v750
      %v799 = vpack.c.b16 %v755, %v751
      %v800 = vpack.c.b16 %v760, %v756
      %v801 = vpack.c.b16 %v761, %v757
      %v802 = vpack.c.b16 %v762, %v758
      %v803 = vpack.c.b16 %v763, %v759
      %v804 = vpack.c.b16 %v768, %v764
      %v805 = vpack.c.b16 %v769, %v765
      %v806 = vpack.c.b16 %v770, %v766
      %v807 = vpack.c.b16 %v771, %v767
      %v808 = vpack.c.b16 %v776, %v772
      %v809 = vpack.c.b16 %v777, %v773
      %v810 = vpack.c.b16 %v778, %v774
      %v811 = vpack.c.b16 %v779, %v775
      %844 = vmatprep.subr.bf16.mxu0 %v781
      %845 = vmatpush1.bf16.msra.mxu0 %v780
      %846 = vmatprep.subr.bf16.mxu0 %v785
      %847 = vmatpush1.bf16.msra.mxu0 %v784
      %848 = vmatprep.subr.bf16.mxu0 %v789
      %849 = vmatpush1.bf16.msra.mxu0 %v788
      %850 = vmatprep.subr.bf16.mxu0 %v793
      %851 = vmatpush1.bf16.msra.mxu0 %v792
      %852 = vmatprep.subr.bf16.mxu0 %v797
      %853 = vmatpush1.bf16.msra.mxu0 %v796
      %854 = vmatprep.subr.bf16.mxu0 %v801
      %855 = vmatpush1.bf16.msra.mxu0 %v800
      %856 = vmatprep.subr.bf16.mxu0 %v805
      %857 = vmatpush1.bf16.msra.mxu0 %v804
      %858 = vmatprep.subr.bf16.mxu0 %v809
      %859 = vmatpush1.bf16.msra.mxu0 %v808
      %860 = vmatprep.subr.bf16.mxu0 0
      %861 = vmatpush1.bf16.msra.mxu0 0
      %862 = vmatprep.subr.bf16.mxu0 0
      %863 = vmatpush1.bf16.msra.mxu0 0
      %864 = vmatprep.subr.bf16.mxu0 0
      %865 = vmatpush1.bf16.msra.mxu0 0
      %866 = vmatprep.subr.bf16.mxu0 0
      %867 = vmatpush1.bf16.msra.mxu0 0
      %868 = vmatprep.subr.bf16.mxu0 0
      %869 = vmatpush1.bf16.msra.mxu0 0
      %870 = vmatprep.subr.bf16.mxu0 0
      %871 = vmatpush1.bf16.msra.mxu0 0
      %872 = vmatprep.subr.bf16.mxu0 0
      %873 = vmatpush1.bf16.msra.mxu0 0
      %874 = vmatprep.subr.bf16.mxu0 0
      %875 = vmatpush1.bf16.msra.mxu0 0
      %876 = vmatprep.mubr.bf16.mxu0 0
      %877 = vmatmul.mubr.bf16.gmra.mrb[0].mxu0 %v683
      %v878 = vpop.f32.mrb[0].mxu0
      %v879 = vadd.f32 0.0, %v878
      %v880 = vpop.f32.mrb[0].mxu0
      %v881 = vadd.f32 0.0, %v880
      %v882 = vpop.f32.mrb[0].mxu0
      %v883 = vadd.f32 0.0, %v882
      %v884 = vpop.f32.mrb[0].mxu0
      %v885 = vadd.f32 0.0, %v884
      %886 = vdwg.mxu0
      %887 = vmatprep.subr.bf16.mxu0 %v783
      %888 = vmatpush1.bf16.msra.mxu0 %v782
      %889 = vmatprep.subr.bf16.mxu0 %v787
      %890 = vmatpush1.bf16.msra.mxu0 %v786
      %891 = vmatprep.subr.bf16.mxu0 %v791
      %892 = vmatpush1.bf16.msra.mxu0 %v790
      %893 = vmatprep.subr.bf16.mxu0 %v795
      %894 = vmatpush1.bf16.msra.mxu0 %v794
      %895 = vmatprep.subr.bf16.mxu0 %v799
      %896 = vmatpush1.bf16.msra.mxu0 %v798
      %897 = vmatprep.subr.bf16.mxu0 %v803
      %898 = vmatpush1.bf16.msra.mxu0 %v802
      %899 = vmatprep.subr.bf16.mxu0 %v807
      %900 = vmatpush1.bf16.msra.mxu0 %v806
      %901 = vmatprep.subr.bf16.mxu0 %v811
      %902 = vmatpush1.bf16.msra.mxu0 %v810
      %903 = vmatprep.subr.bf16.mxu0 0
      %904 = vmatpush1.bf16.msra.mxu0 0
      %905 = vmatprep.subr.bf16.mxu0 0
      %906 = vmatpush1.bf16.msra.mxu0 0
      %907 = vmatprep.subr.bf16.mxu0 0
      %908 = vmatpush1.bf16.msra.mxu0 0
      %909 = vmatprep.subr.bf16.mxu0 0
      %910 = vmatpush1.bf16.msra.mxu0 0
      %911 = vmatprep.subr.bf16.mxu0 0
      %912 = vmatpush1.bf16.msra.mxu0 0
      %913 = vmatprep.subr.bf16.mxu0 0
      %914 = vmatpush1.bf16.msra.mxu0 0
      %915 = vmatprep.subr.bf16.mxu0 0
      %916 = vmatpush1.bf16.msra.mxu0 0
      %917 = vmatprep.subr.bf16.mxu0 0
      %918 = vmatpush1.bf16.msra.mxu0 0
      %919 = vmatprep.mubr.bf16.mxu0 0
      %920 = vmatmul.mubr.bf16.gmra.mrb[0].mxu0 %v683
      %v921 = vpop.f32.mrb[0].mxu0
      %v922 = vadd.f32 0.0, %v921
      %v923 = vpop.f32.mrb[0].mxu0
      %v924 = vadd.f32 0.0, %v923
      %v925 = vpop.f32.mrb[0].mxu0
      %v926 = vadd.f32 0.0, %v925
      %v927 = vpop.f32.mrb[0].mxu0
      %v928 = vadd.f32 0.0, %v927
      %929 = vdwg.mxu0
      %v930 = vadd.f32 %v675, %v879
      %v931 = vadd.f32 %v676, %v881
      %v932 = vadd.f32 %v677, %v922
      %v933 = vadd.f32 %v678, %v924
      %v934 = vadd.f32 %v679, %v883
      %v935 = vadd.f32 %v680, %v885
      %v936 = vadd.f32 %v681, %v926
      %v937 = vadd.f32 %v682, %v928
      %v938 = vxor.u32 %v930, 2147483648
      %v939 = vxor.u32 %v934, 2147483648
      %v940 = vmul.f32 %v938, 1.442695
      %v941 = vpow.pop %v940
      %v942 = vmul.f32 %v939, 1.442695
      %v943 = vpow.pop %v942
      %v944 = vadd.f32 %v941, 1.0
      %v945 = vadd.f32 %v943, 1.0
      %v946 = vrcp.pop %v944
      %v947 = vmul.f32 1.0, %v946
      %v948 = vrcp.pop %v945
      %v949 = vmul.f32 1.0, %v948
      %v950 = vxor.u32 %v931, 2147483648
      %v951 = vxor.u32 %v935, 2147483648
      %v952 = vmul.f32 %v950, 1.442695
      %v953 = vpow.pop %v952
      %v954 = vmul.f32 %v951, 1.442695
      %v955 = vpow.pop %v954
      %v956 = vadd.f32 %v953, 1.0
      %v957 = vadd.f32 %v955, 1.0
      %v958 = vrcp.pop %v956
      %v959 = vmul.f32 1.0, %v958
      %v960 = vrcp.pop %v957
      %v961 = vmul.f32 1.0, %v960
      %v962 = vtanh.pop %v932
      %v963 = vtanh.pop %v936
      %v964 = vxor.u32 %v933, 2147483648
      %v965 = vxor.u32 %v937, 2147483648
      %v966 = vmul.f32 %v964, 1.442695
      %v967 = vpow.pop %v966
      %v968 = vmul.f32 %v965, 1.442695
      %v969 = vpow.pop %v968
      %v970 = vadd.f32 %v967, 1.0
      %v971 = vadd.f32 %v969, 1.0
      %v972 = vrcp.pop %v970
      %v973 = vmul.f32 1.0, %v972
      %v974 = vrcp.pop %v971
      %v975 = vmul.f32 1.0, %v974
      %v976 = vmul.f32 %v959, %v670
      %v977 = vmul.f32 %v961, %v671
      %v978 = vmul.f32 %v947, %v962
      %v979 = vmul.f32 %v949, %v963
      %v980 = vadd.f32 %v976, %v978
      %v981 = vadd.f32 %v977, %v979
      %v982 = vtanh.pop %v980
      %v983 = vtanh.pop %v981
      %v984 = vmul.f32 %v973, %v982
      %v985 = vmul.f32 %v975, %v983
      %v986 = vpack.c.bf16 %v985, %v984
      %v988 = vunpack.c.l.b16 %v986
      %v989 = vunpack.c.h.b16 %v986
      %v990 = vpack.c.b16 %v988, %v988
      %v991 = vpack.c.b16 %v989, %v989
      %s994 = smul.u32 %s663, 2
      %s995 = smul.addr %s994, 4
      %s996 = scalar_lea.vmem %s4, %s995
      %997 = vst [vmem:[%s996] sm:$0xf] %v990
      %998 = vst [vmem:[%s996 + $0x4] sm:$0xf] %v991
    $region34: #{lstm_forward.2} parent=1 // loop_footer
      %s665 = sadd.s32 %s663, 1
    $region35: #{lstm_forward.2} parent=1 // loop_footer_branch
      %662 = sbr.rel target = $region31
    $region36: #{lstm_forward.2} parent=1 // loop_exit
      _
    %999 = vst [vmem:[#allocation2] sm:$0xff] %v668
    %1000 = vst [vmem:[#allocation2 + $0x8] sm:$0xff] %v669
    %1001 = vst [vmem:[#allocation3] sm:$0xff] %v670
    %1002 = vst [vmem:[#allocation3 + $0x8] sm:$0xff] %v671
    // Predicated region
    $region37: #{lstm_forward.2} parent=1 // pred_check
      _
    $region38: #{lstm_forward.2} parent=1 // pred_check_branch
      %1004 = sbr.rel (0) target = $region40
    $region39: #{lstm_forward.2} parent=1 // pred_region
      _
    $region40: #{lstm_forward.2} parent=1 // pred_fallthru
      _
    // Predicated region
    $region41: #{lstm_forward.2} parent=1 // pred_check
      _
    $region42: #{lstm_forward.2} parent=1 // pred_check_branch
      %1006 = sbr.rel (0) target = $region44
    $region43: #{lstm_forward.2} parent=1 // pred_region
      _
    $region44: #{lstm_forward.2} parent=1 // pred_fallthru
      _
    %1007 = vsyncpa [#allocation6], 1
    %1008 = vsyncpa [#allocation8], 1

// kernel: lstm_forward.3
$region0: #{lstm_forward.3}
  #allocation0 [shape = 'u32[]', space=smem, size = 0x4, offset = 0x4, fixed_abs, tag = 'smem constant byte address 0x4 - core index']
  #allocation1 [shape = 'u32[144,128]{1,0:T(1,128)}', space=vmem, size = 0x12000, scoped, tag = 'internal scratch']
  #allocation2 [shape = 'f32[16,128]{1,0:T(8,128)}', space=vmem, size = 0x2000, scoped, tag = 'scratch operand']
  #allocation3 [shape = 'f32[16,128]{1,0:T(8,128)}', space=vmem, size = 0x2000, scoped, tag = 'scratch operand']
  #allocation4 [shape = 'f32[8,16,512]{2,1,0:T(8,128)}', space=vmem, size = 0x40000, scoped, tag = 'scratch operand']
  %s0 = inlined_call_operand.vmem [shape: bf16[8,16,128], index: 0, kind: input, shape index: {}]
  %s1 = inlined_call_operand.vmem [shape: bf16[128,512], index: 1, kind: input, shape index: {}]
  %s2 = inlined_call_operand.vmem [shape: bf16[128,512], index: 2, kind: input, shape index: {}]
  %s3 = inlined_call_operand.vmem [shape: f32[1,512], index: 3, kind: input, shape index: {}]
  %s4 = inlined_call_operand.vmem [shape: bf16[128,128], index: 4, kind: input, shape index: {}]
  %s5 = inlined_call_operand.vmem [shape: f32[1,128], index: 5, kind: input, shape index: {}]
  %s6 = inlined_call_operand.vmem [shape: f32[16,128], index: 6, kind: output, shape index: {}]
  %s7 = sld [smem:[#allocation0]]
  $region49: #{lstm_forward.3} parent=0
    _
  %s9 = ssub.s32 1, %s7
  %s10 = scalar_select 0, %s9, %s7
  // Predicated region
  $region2: #{lstm_forward.3} parent=0 // pred_check
    _
  $region3: #{lstm_forward.3} parent=0 // pred_check_branch
    %12 = sbr.rel (0) target = $region5
  $region4: #{lstm_forward.3} parent=0 // pred_region
    _
  $region5: #{lstm_forward.3} parent=0 // pred_fallthru
    _
  // Predicated region
  $region6: #{lstm_forward.3} parent=0 // pred_check
    _
  $region7: #{lstm_forward.3} parent=0 // pred_check_branch
    %14 = sbr.rel (0) target = $region9
  $region8: #{lstm_forward.3} parent=0 // pred_region
    _
  $region9: #{lstm_forward.3} parent=0 // pred_fallthru
    _
  // Predicated region
  $region10: #{lstm_forward.3} parent=0 // pred_check
    _
  $region11: #{lstm_forward.3} parent=0 // pred_check_branch
    %16 = sbr.rel (0) target = $region13
  $region12: #{lstm_forward.3} parent=0 // pred_region
    _
  $region13: #{lstm_forward.3} parent=0 // pred_fallthru
    _
  // Predicated region
  $region14: #{lstm_forward.3} parent=0 // pred_check
    _
  $region15: #{lstm_forward.3} parent=0 // pred_check_branch
    %18 = sbr.rel (0) target = $region17
  $region16: #{lstm_forward.3} parent=0 // pred_region
    _
  $region17: #{lstm_forward.3} parent=0 // pred_fallthru
    _
  // Predicated region
  $region18: #{lstm_forward.3} parent=0 // pred_check
    _
  $region19: #{lstm_forward.3} parent=0 // pred_check_branch
    %20 = sbr.rel (0) target = $region21
  $region20: #{lstm_forward.3} parent=0 // pred_region
    _
  $region21: #{lstm_forward.3} parent=0 // pred_fallthru
    _
  // Predicated region
  $region22: #{lstm_forward.3} parent=0 // pred_check
    _
  $region23: #{lstm_forward.3} parent=0 // pred_check_branch
    %22 = sbr.rel (0) target = $region25
  $region24: #{lstm_forward.3} parent=0 // pred_region
    _
  $region25: #{lstm_forward.3} parent=0 // pred_fallthru
    _
  %p24 = scmp.eq.s32.totalorder 0, 0
  // Predicated region
  $region26: #{lstm_forward.3} parent=0 // pred_check
    %p25 = pneg %p24
  $region27: #{lstm_forward.3} parent=0 // pred_check_branch
    %27 = sbr.rel (%p25) target = $region29
  $region28: #{lstm_forward.3} parent=0 // pred_region
    %28 = vst [vmem:[#allocation2] sm:$0xff] 0.0
    %29 = vst [vmem:[#allocation2 + $0x8] sm:$0xff] 0.0
    %30 = vst [vmem:[#allocation3] sm:$0xff] 0.0
    %31 = vst [vmem:[#allocation3 + $0x8] sm:$0xff] 0.0
  $region29: #{lstm_forward.3} parent=0 // pred_fallthru
    _
  %v32 = vld [vmem:[%s0] sm:$0xf]
  %v33 = vld [vmem:[%s0 + $0x4] sm:$0xf]
  %v34 = vld [vmem:[%s0 + $0x8] sm:$0xf]
  %v35 = vld [vmem:[%s0 + $0xc] sm:$0xf]
  %v36 = vld [vmem:[%s0 + $0x10] sm:$0xf]
  %v37 = vld [vmem:[%s0 + $0x14] sm:$0xf]
  %v38 = vld [vmem:[%s0 + $0x18] sm:$0xf]
  %v39 = vld [vmem:[%s0 + $0x1c] sm:$0xf]
  %v40 = vld [vmem:[%s0 + $0x20] sm:$0xf]
  %v41 = vld [vmem:[%s0 + $0x24] sm:$0xf]
  %v42 = vld [vmem:[%s0 + $0x28] sm:$0xf]
  %v43 = vld [vmem:[%s0 + $0x2c] sm:$0xf]
  %v44 = vld [vmem:[%s0 + $0x30] sm:$0xf]
  %v45 = vld [vmem:[%s0 + $0x34] sm:$0xf]
  %v46 = vld [vmem:[%s0 + $0x38] sm:$0xf]
  %v47 = vld [vmem:[%s0 + $0x3c] sm:$0xf]
  %v48 = vld [vmem:[%s1] sm:$0xff]
  %v49 = vld [vmem:[%s1 + $0x8] sm:$0xff]
  %v50 = vld [vmem:[%s1 + $0x10] sm:$0xff]
  %v51 = vld [vmem:[%s1 + $0x18] sm:$0xff]
  %v52 = vld [vmem:[%s1 + $0x20] sm:$0xff]
  %v53 = vld [vmem:[%s1 + $0x28] sm:$0xff]
  %v54 = vld [vmem:[%s1 + $0x30] sm:$0xff]
  %v55 = vld [vmem:[%s1 + $0x38] sm:$0xff]
  %v56 = vld [vmem:[%s1 + $0x40] sm:$0xff]
  %v57 = vld [vmem:[%s1 + $0x48] sm:$0xff]
  %v58 = vld [vmem:[%s1 + $0x50] sm:$0xff]
  %v59 = vld [vmem:[%s1 + $0x58] sm:$0xff]
  %v60 = vld [vmem:[%s1 + $0x60] sm:$0xff]
  %v61 = vld [vmem:[%s1 + $0x68] sm:$0xff]
  %v62 = vld [vmem:[%s1 + $0x70] sm:$0xff]
  %v63 = vld [vmem:[%s1 + $0x78] sm:$0xff]
  %v64 = vld [vmem:[%s1 + $0x80] sm:$0xff]
  %v65 = vld [vmem:[%s1 + $0x88] sm:$0xff]
  %v66 = vld [vmem:[%s1 + $0x90] sm:$0xff]
  %v67 = vld [vmem:[%s1 + $0x98] sm:$0xff]
  %v68 = vld [vmem:[%s1 + $0xa0] sm:$0xff]
  %v69 = vld [vmem:[%s1 + $0xa8] sm:$0xff]
  %v70 = vld [vmem:[%s1 + $0xb0] sm:$0xff]
  %v71 = vld [vmem:[%s1 + $0xb8] sm:$0xff]
  %v72 = vld [vmem:[%s1 + $0xc0] sm:$0xff]
  %v73 = vld [vmem:[%s1 + $0xc8] sm:$0xff]
  %v74 = vld [vmem:[%s1 + $0xd0] sm:$0xff]
  %v75 = vld [vmem:[%s1 + $0xd8] sm:$0xff]
  %v76 = vld [vmem:[%s1 + $0xe0] sm:$0xff]
  %v77 = vld [vmem:[%s1 + $0xe8] sm:$0xff]
  %v78 = vld [vmem:[%s1 + $0xf0] sm:$0xff]
  %v79 = vld [vmem:[%s1 + $0xf8] sm:$0xff]
  %v80 = vld [vmem:[%s3] sm:$0xf]
  %v82 = vlaneseq
  %v83 = vshrl.u32 %v82, 7
  %v84 = vsub.s32 0, %v83
  %v85 = vrot.slane %v80, %v84
  %v86 = vlaneseq
  %v87 = vshrl.u32 %v86, 7
  %v88 = vsub.s32 1, %v87
  %v89 = vrot.slane %v80, %v88
  %v90 = vlaneseq
  %v91 = vshrl.u32 %v90, 7
  %v92 = vsub.s32 2, %v91
  %v93 = vrot.slane %v80, %v92
  %v94 = vlaneseq
  %v95 = vshrl.u32 %v94, 7
  %v96 = vsub.s32 3, %v95
  %v97 = vrot.slane %v80, %v96
  %v118 = vunpack.c.l.b16 %v32
  %v119 = vunpack.c.l.b16 %v33
  %v120 = vunpack.c.l.b16 %v34
  %v121 = vunpack.c.l.b16 %v35
  %v122 = vunpack.c.l.b16 %v36
  %v123 = vunpack.c.l.b16 %v37
  %v124 = vunpack.c.l.b16 %v38
  %v125 = vunpack.c.l.b16 %v39
  %v126 = vunpack.c.l.b16 %v40
  %v127 = vunpack.c.l.b16 %v41
  %v128 = vunpack.c.l.b16 %v42
  %v129 = vunpack.c.l.b16 %v43
  %v130 = vunpack.c.l.b16 %v44
  %v131 = vunpack.c.l.b16 %v45
  %v132 = vunpack.c.l.b16 %v46
  %v133 = vunpack.c.l.b16 %v47
  %v134 = vpack.c.b16 %v119, %v118
  %v135 = vpack.c.b16 %v121, %v120
  %v136 = vpack.c.b16 %v123, %v122
  %v137 = vpack.c.b16 %v125, %v124
  %v138 = vpack.c.b16 %v127, %v126
  %v139 = vpack.c.b16 %v129, %v128
  %v140 = vpack.c.b16 %v131, %v130
  %v141 = vpack.c.b16 %v133, %v132
  %v182 = vunpack.c.l.b16 %v48
  %v183 = vunpack.c.h.b16 %v48
  %v184 = vunpack.c.l.b16 %v49
  %v185 = vunpack.c.h.b16 %v49
  %v186 = vunpack.c.l.b16 %v50
  %v187 = vunpack.c.h.b16 %v50
  %v188 = vunpack.c.l.b16 %v51
  %v189 = vunpack.c.h.b16 %v51
  %v190 = vunpack.c.l.b16 %v52
  %v191 = vunpack.c.h.b16 %v52
  %v192 = vunpack.c.l.b16 %v53
  %v193 = vunpack.c.h.b16 %v53
  %v194 = vunpack.c.l.b16 %v54
  %v195 = vunpack.c.h.b16 %v54
  %v196 = vunpack.c.l.b16 %v55
  %v197 = vunpack.c.h.b16 %v55
  %v198 = vunpack.c.l.b16 %v56
  %v199 = vunpack.c.h.b16 %v56
  %v200 = vunpack.c.l.b16 %v57
  %v201 = vunpack.c.h.b16 %v57
  %v202 = vunpack.c.l.b16 %v58
  %v203 = vunpack.c.h.b16 %v58
  %v204 = vunpack.c.l.b16 %v59
  %v205 = vunpack.c.h.b16 %v59
  %v206 = vunpack.c.l.b16 %v60
  %v207 = vunpack.c.h.b16 %v60
  %v208 = vunpack.c.l.b16 %v61
  %v209 = vunpack.c.h.b16 %v61
  %v210 = vunpack.c.l.b16 %v62
  %v211 = vunpack.c.h.b16 %v62
  %v212 = vunpack.c.l.b16 %v63
  %v213 = vunpack.c.h.b16 %v63
  %v214 = vunpack.c.l.b16 %v64
  %v215 = vunpack.c.h.b16 %v64
  %v216 = vunpack.c.l.b16 %v65
  %v217 = vunpack.c.h.b16 %v65
  %v218 = vunpack.c.l.b16 %v66
  %v219 = vunpack.c.h.b16 %v66
  %v220 = vunpack.c.l.b16 %v67
  %v221 = vunpack.c.h.b16 %v67
  %v222 = vunpack.c.l.b16 %v68
  %v223 = vunpack.c.h.b16 %v68
  %v224 = vunpack.c.l.b16 %v69
  %v225 = vunpack.c.h.b16 %v69
  %v226 = vunpack.c.l.b16 %v70
  %v227 = vunpack.c.h.b16 %v70
  %v228 = vunpack.c.l.b16 %v71
  %v229 = vunpack.c.h.b16 %v71
  %v230 = vunpack.c.l.b16 %v72
  %v231 = vunpack.c.h.b16 %v72
  %v232 = vunpack.c.l.b16 %v73
  %v233 = vunpack.c.h.b16 %v73
  %v234 = vunpack.c.l.b16 %v74
  %v235 = vunpack.c.h.b16 %v74
  %v236 = vunpack.c.l.b16 %v75
  %v237 = vunpack.c.h.b16 %v75
  %v238 = vunpack.c.l.b16 %v76
  %v239 = vunpack.c.h.b16 %v76
  %v240 = vunpack.c.l.b16 %v77
  %v241 = vunpack.c.h.b16 %v77
  %v242 = vunpack.c.l.b16 %v78
  %v243 = vunpack.c.h.b16 %v78
  %v244 = vunpack.c.l.b16 %v79
  %v245 = vunpack.c.h.b16 %v79
  %v246 = vpack.c.b16 %v186, %v182
  %v247 = vpack.c.b16 %v187, %v183
  %v248 = vpack.c.b16 %v188, %v184
  %v249 = vpack.c.b16 %v189, %v185
  %v250 = vpack.c.b16 %v194, %v190
  %v251 = vpack.c.b16 %v195, %v191
  %v252 = vpack.c.b16 %v196, %v192
  %v253 = vpack.c.b16 %v197, %v193
  %v254 = vpack.c.b16 %v202, %v198
  %v255 = vpack.c.b16 %v203, %v199
  %v256 = vpack.c.b16 %v204, %v200
  %v257 = vpack.c.b16 %v205, %v201
  %v258 = vpack.c.b16 %v210, %v206
  %v259 = vpack.c.b16 %v211, %v207
  %v260 = vpack.c.b16 %v212, %v208
  %v261 = vpack.c.b16 %v213, %v209
  %v262 = vpack.c.b16 %v218, %v214
  %v263 = vpack.c.b16 %v219, %v215
  %v264 = vpack.c.b16 %v220, %v216
  %v265 = vpack.c.b16 %v221, %v217
  %v266 = vpack.c.b16 %v226, %v222
  %v267 = vpack.c.b16 %v227, %v223
  %v268 = vpack.c.b16 %v228, %v224
  %v269 = vpack.c.b16 %v229, %v225
  %v270 = vpack.c.b16 %v234, %v230
  %v271 = vpack.c.b16 %v235, %v231
  %v272 = vpack.c.b16 %v236, %v232
  %v273 = vpack.c.b16 %v237, %v233
  %v274 = vpack.c.b16 %v242, %v238
  %v275 = vpack.c.b16 %v243, %v239
  %v276 = vpack.c.b16 %v244, %v240
  %v277 = vpack.c.b16 %v245, %v241
  %310 = vmatprep.subr.bf16.mxu0 %v247
  %311 = vmatpush1.bf16.msra.mxu0 %v246
  %312 = vmatprep.subr.bf16.mxu0 %v251
  %313 = vmatpush1.bf16.msra.mxu0 %v250
  %314 = vmatprep.subr.bf16.mxu0 %v255
  %315 = vmatpush1.bf16.msra.mxu0 %v254
  %316 = vmatprep.subr.bf16.mxu0 %v259
  %317 = vmatpush1.bf16.msra.mxu0 %v258
  %318 = vmatprep.subr.bf16.mxu0 %v263
  %319 = vmatpush1.bf16.msra.mxu0 %v262
  %320 = vmatprep.subr.bf16.mxu0 %v267
  %321 = vmatpush1.bf16.msra.mxu0 %v266
  %322 = vmatprep.subr.bf16.mxu0 %v271
  %323 = vmatpush1.bf16.msra.mxu0 %v270
  %324 = vmatprep.subr.bf16.mxu0 %v275
  %325 = vmatpush1.bf16.msra.mxu0 %v274
  %326 = vmatprep.subr.bf16.mxu0 0
  %327 = vmatpush1.bf16.msra.mxu0 0
  %328 = vmatprep.subr.bf16.mxu0 0
  %329 = vmatpush1.bf16.msra.mxu0 0
  %330 = vmatprep.subr.bf16.mxu0 0
  %331 = vmatpush1.bf16.msra.mxu0 0
  %332 = vmatprep.subr.bf16.mxu0 0
  %333 = vmatpush1.bf16.msra.mxu0 0
  %334 = vmatprep.subr.bf16.mxu0 0
  %335 = vmatpush1.bf16.msra.mxu0 0
  %336 = vmatprep.subr.bf16.mxu0 0
  %337 = vmatpush1.bf16.msra.mxu0 0
  %338 = vmatprep.subr.bf16.mxu0 0
  %339 = vmatpush1.bf16.msra.mxu0 0
  %340 = vmatprep.subr.bf16.mxu0 0
  %341 = vmatpush1.bf16.msra.mxu0 0
  %342 = vmatprep.mubr.bf16.mxu0 0
  %343 = vmatmul.mubr.bf16.gmra.mrb[0].mxu0 %v134
  %v344 = vpop.f32.mrb[0].mxu0
  %v345 = vadd.f32 %v85, %v344
  %v346 = vpop.f32.mrb[0].mxu0
  %v347 = vadd.f32 %v89, %v346
  %v348 = vpop.f32.mrb[0].mxu0
  %v349 = vadd.f32 %v85, %v348
  %v350 = vpop.f32.mrb[0].mxu0
  %v351 = vadd.f32 %v89, %v350
  %352 = vmatprep.mubr.bf16.mxu0 0
  %353 = vmatmul.mubr.bf16.gmra.mrb[0].mxu0 %v135
  %v354 = vpop.f32.mrb[0].mxu0
  %v355 = vadd.f32 %v85, %v354
  %v356 = vpop.f32.mrb[0].mxu0
  %v357 = vadd.f32 %v89, %v356
  %v358 = vpop.f32.mrb[0].mxu0
  %v359 = vadd.f32 %v85, %v358
  %v360 = vpop.f32.mrb[0].mxu0
  %v361 = vadd.f32 %v89, %v360
  %362 = vmatprep.mubr.bf16.mxu0 0
  %363 = vmatmul.mubr.bf16.gmra.mrb[0].mxu0 %v136
  %v364 = vpop.f32.mrb[0].mxu0
  %v365 = vadd.f32 %v85, %v364
  %v366 = vpop.f32.mrb[0].mxu0
  %v367 = vadd.f32 %v89, %v366
  %v368 = vpop.f32.mrb[0].mxu0
  %v369 = vadd.f32 %v85, %v368
  %v370 = vpop.f32.mrb[0].mxu0
  %v371 = vadd.f32 %v89, %v370
  %372 = vmatprep.mubr.bf16.mxu0 0
  %373 = vmatmul.mubr.bf16.gmra.mrb[0].mxu0 %v137
  %v374 = vpop.f32.mrb[0].mxu0
  %v375 = vadd.f32 %v85, %v374
  %v376 = vpop.f32.mrb[0].mxu0
  %v377 = vadd.f32 %v89, %v376
  %v378 = vpop.f32.mrb[0].mxu0
  %v379 = vadd.f32 %v85, %v378
  %v380 = vpop.f32.mrb[0].mxu0
  %v381 = vadd.f32 %v89, %v380
  %382 = vmatprep.mubr.bf16.mxu0 0
  %383 = vmatmul.mubr.bf16.gmra.mrb[0].mxu0 %v138
  %v384 = vpop.f32.mrb[0].mxu0
  %v385 = vadd.f32 %v85, %v384
  %v386 = vpop.f32.mrb[0].mxu0
  %v387 = vadd.f32 %v89, %v386
  %v388 = vpop.f32.mrb[0].mxu0
  %v389 = vadd.f32 %v85, %v388
  %v390 = vpop.f32.mrb[0].mxu0
  %v391 = vadd.f32 %v89, %v390
  %392 = vmatprep.mubr.bf16.mxu0 0
  %393 = vmatmul.mubr.bf16.gmra.mrb[0].mxu0 %v139
  %v394 = vpop.f32.mrb[0].mxu0
  %v395 = vadd.f32 %v85, %v394
  %v396 = vpop.f32.mrb[0].mxu0
  %v397 = vadd.f32 %v89, %v396
  %v398 = vpop.f32.mrb[0].mxu0
  %v399 = vadd.f32 %v85, %v398
  %v400 = vpop.f32.mrb[0].mxu0
  %v401 = vadd.f32 %v89, %v400
  %402 = vmatprep.mubr.bf16.mxu0 0
  %403 = vmatmul.mubr.bf16.gmra.mrb[0].mxu0 %v140
  %v404 = vpop.f32.mrb[0].mxu0
  %v405 = vadd.f32 %v85, %v404
  %v406 = vpop.f32.mrb[0].mxu0
  %v407 = vadd.f32 %v89, %v406
  %v408 = vpop.f32.mrb[0].mxu0
  %v409 = vadd.f32 %v85, %v408
  %v410 = vpop.f32.mrb[0].mxu0
  %v411 = vadd.f32 %v89, %v410
  %412 = vmatprep.mubr.bf16.mxu0 0
  %413 = vmatmul.mubr.bf16.gmra.mrb[0].mxu0 %v141
  %v414 = vpop.f32.mrb[0].mxu0
  %v415 = vadd.f32 %v85, %v414
  %v416 = vpop.f32.mrb[0].mxu0
  %v417 = vadd.f32 %v89, %v416
  %v418 = vpop.f32.mrb[0].mxu0
  %v419 = vadd.f32 %v85, %v418
  %v420 = vpop.f32.mrb[0].mxu0
  %v421 = vadd.f32 %v89, %v420
  %422 = vdwg.mxu0
  %423 = vmatprep.subr.bf16.mxu0 %v249
  %424 = vmatpush1.bf16.msra.mxu0 %v248
  %425 = vmatprep.subr.bf16.mxu0 %v253
  %426 = vmatpush1.bf16.msra.mxu0 %v252
  %427 = vmatprep.subr.bf16.mxu0 %v257
  %428 = vmatpush1.bf16.msra.mxu0 %v256
  %429 = vmatprep.subr.bf16.mxu0 %v261
  %430 = vmatpush1.bf16.msra.mxu0 %v260
  %431 = vmatprep.subr.bf16.mxu0 %v265
  %432 = vmatpush1.bf16.msra.mxu0 %v264
  %433 = vmatprep.subr.bf16.mxu0 %v269
  %434 = vmatpush1.bf16.msra.mxu0 %v268
  %435 = vmatprep.subr.bf16.mxu0 %v273
  %436 = vmatpush1.bf16.msra.mxu0 %v272
  %437 = vmatprep.subr.bf16.mxu0 %v277
  %438 = vmatpush1.bf16.msra.mxu0 %v276
  %439 = vmatprep.subr.bf16.mxu0 0
  %440 = vmatpush1.bf16.msra.mxu0 0
  %441 = vmatprep.subr.bf16.mxu0 0
  %442 = vmatpush1.bf16.msra.mxu0 0
  %443 = vmatprep.subr.bf16.mxu0 0
  %444 = vmatpush1.bf16.msra.mxu0 0
  %445 = vmatprep.subr.bf16.mxu0 0
  %446 = vmatpush1.bf16.msra.mxu0 0
  %447 = vmatprep.subr.bf16.mxu0 0
  %448 = vmatpush1.bf16.msra.mxu0 0
  %449 = vmatprep.subr.bf16.mxu0 0
  %450 = vmatpush1.bf16.msra.mxu0 0
  %451 = vmatprep.subr.bf16.mxu0 0
  %452 = vmatpush1.bf16.msra.mxu0 0
  %453 = vmatprep.subr.bf16.mxu0 0
  %454 = vmatpush1.bf16.msra.mxu0 0
  %455 = vmatprep.mubr.bf16.mxu0 0
  %456 = vmatmul.mubr.bf16.gmra.mrb[0].mxu0 %v134
  %v457 = vpop.f32.mrb[0].mxu0
  %v458 = vadd.f32 %v93, %v457
  %v459 = vpop.f32.mrb[0].mxu0
  %v460 = vadd.f32 %v97, %v459
  %v461 = vpop.f32.mrb[0].mxu0
  %v462 = vadd.f32 %v93, %v461
  %v463 = vpop.f32.mrb[0].mxu0
  %v464 = vadd.f32 %v97, %v463
  %465 = vmatprep.mubr.bf16.mxu0 0
  %466 = vmatmul.mubr.bf16.gmra.mrb[0].mxu0 %v135
  %v467 = vpop.f32.mrb[0].mxu0
  %v468 = vadd.f32 %v93, %v467
  %v469 = vpop.f32.mrb[0].mxu0
  %v470 = vadd.f32 %v97, %v469
  %v471 = vpop.f32.mrb[0].mxu0
  %v472 = vadd.f32 %v93, %v471
  %v473 = vpop.f32.mrb[0].mxu0
  %v474 = vadd.f32 %v97, %v473
  %475 = vmatprep.mubr.bf16.mxu0 0
  %476 = vmatmul.mubr.bf16.gmra.mrb[0].mxu0 %v136
  %v477 = vpop.f32.mrb[0].mxu0
  %v478 = vadd.f32 %v93, %v477
  %v479 = vpop.f32.mrb[0].mxu0
  %v480 = vadd.f32 %v97, %v479
  %v481 = vpop.f32.mrb[0].mxu0
  %v482 = vadd.f32 %v93, %v481
  %v483 = vpop.f32.mrb[0].mxu0
  %v484 = vadd.f32 %v97, %v483
  %485 = vmatprep.mubr.bf16.mxu0 0
  %486 = vmatmul.mubr.bf16.gmra.mrb[0].mxu0 %v137
  %v487 = vpop.f32.mrb[0].mxu0
  %v488 = vadd.f32 %v93, %v487
  %v489 = vpop.f32.mrb[0].mxu0
  %v490 = vadd.f32 %v97, %v489
  %v491 = vpop.f32.mrb[0].mxu0
  %v492 = vadd.f32 %v93, %v491
  %v493 = vpop.f32.mrb[0].mxu0
  %v494 = vadd.f32 %v97, %v493
  %495 = vmatprep.mubr.bf16.mxu0 0
  %496 = vmatmul.mubr.bf16.gmra.mrb[0].mxu0 %v138
  %v497 = vpop.f32.mrb[0].mxu0
  %v498 = vadd.f32 %v93, %v497
  %v499 = vpop.f32.mrb[0].mxu0
  %v500 = vadd.f32 %v97, %v499
  %v501 = vpop.f32.mrb[0].mxu0
  %v502 = vadd.f32 %v93, %v501
  %v503 = vpop.f32.mrb[0].mxu0
  %v504 = vadd.f32 %v97, %v503
  %505 = vmatprep.mubr.bf16.mxu0 0
  %506 = vmatmul.mubr.bf16.gmra.mrb[0].mxu0 %v139
  %v507 = vpop.f32.mrb[0].mxu0
  %v508 = vadd.f32 %v93, %v507
  %v509 = vpop.f32.mrb[0].mxu0
  %v510 = vadd.f32 %v97, %v509
  %v511 = vpop.f32.mrb[0].mxu0
  %v512 = vadd.f32 %v93, %v511
  %v513 = vpop.f32.mrb[0].mxu0
  %v514 = vadd.f32 %v97, %v513
  %515 = vmatprep.mubr.bf16.mxu0 0
  %516 = vmatmul.mubr.bf16.gmra.mrb[0].mxu0 %v140
  %v517 = vpop.f32.mrb[0].mxu0
  %v518 = vadd.f32 %v93, %v517
  %v519 = vpop.f32.mrb[0].mxu0
  %v520 = vadd.f32 %v97, %v519
  %v521 = vpop.f32.mrb[0].mxu0
  %v522 = vadd.f32 %v93, %v521
  %v523 = vpop.f32.mrb[0].mxu0
  %v524 = vadd.f32 %v97, %v523
  %525 = vmatprep.mubr.bf16.mxu0 0
  %526 = vmatmul.mubr.bf16.gmra.mrb[0].mxu0 %v141
  %v527 = vpop.f32.mrb[0].mxu0
  %v528 = vadd.f32 %v93, %v527
  %v529 = vpop.f32.mrb[0].mxu0
  %v530 = vadd.f32 %v97, %v529
  %v531 = vpop.f32.mrb[0].mxu0
  %v532 = vadd.f32 %v93, %v531
  %v533 = vpop.f32.mrb[0].mxu0
  %v534 = vadd.f32 %v97, %v533
  %535 = vdwg.mxu0
  %536 = vst [vmem:[#allocation4] sm:$0xff] %v345
  %537 = vst [vmem:[#allocation4 + $0x8] sm:$0xff] %v347
  %538 = vst [vmem:[#allocation4 + $0x10] sm:$0xff] %v458
  %539 = vst [vmem:[#allocation4 + $0x18] sm:$0xff] %v460
  %540 = vst [vmem:[#allocation4 + $0x20] sm:$0xff] %v349
  %541 = vst [vmem:[#allocation4 + $0x28] sm:$0xff] %v351
  %542 = vst [vmem:[#allocation4 + $0x30] sm:$0xff] %v462
  %543 = vst [vmem:[#allocation4 + $0x38] sm:$0xff] %v464
  %544 = vst [vmem:[#allocation4 + $0x40] sm:$0xff] %v355
  %545 = vst [vmem:[#allocation4 + $0x48] sm:$0xff] %v357
  %546 = vst [vmem:[#allocation4 + $0x50] sm:$0xff] %v468
  %547 = vst [vmem:[#allocation4 + $0x58] sm:$0xff] %v470
  %548 = vst [vmem:[#allocation4 + $0x60] sm:$0xff] %v359
  %549 = vst [vmem:[#allocation4 + $0x68] sm:$0xff] %v361
  %550 = vst [vmem:[#allocation4 + $0x70] sm:$0xff] %v472
  %551 = vst [vmem:[#allocation4 + $0x78] sm:$0xff] %v474
  %552 = vst [vmem:[#allocation4 + $0x80] sm:$0xff] %v365
  %553 = vst [vmem:[#allocation4 + $0x88] sm:$0xff] %v367
  %554 = vst [vmem:[#allocation4 + $0x90] sm:$0xff] %v478
  %555 = vst [vmem:[#allocation4 + $0x98] sm:$0xff] %v480
  %556 = vst [vmem:[#allocation4 + $0xa0] sm:$0xff] %v369
  %557 = vst [vmem:[#allocation4 + $0xa8] sm:$0xff] %v371
  %558 = vst [vmem:[#allocation4 + $0xb0] sm:$0xff] %v482
  %559 = vst [vmem:[#allocation4 + $0xb8] sm:$0xff] %v484
  %560 = vst [vmem:[#allocation4 + $0xc0] sm:$0xff] %v375
  %561 = vst [vmem:[#allocation4 + $0xc8] sm:$0xff] %v377
  %562 = vst [vmem:[#allocation4 + $0xd0] sm:$0xff] %v488
  %563 = vst [vmem:[#allocation4 + $0xd8] sm:$0xff] %v490
  %564 = vst [vmem:[#allocation4 + $0xe0] sm:$0xff] %v379
  %565 = vst [vmem:[#allocation4 + $0xe8] sm:$0xff] %v381
  %566 = vst [vmem:[#allocation4 + $0xf0] sm:$0xff] %v492
  %567 = vst [vmem:[#allocation4 + $0xf8] sm:$0xff] %v494
  %568 = vst [vmem:[#allocation4 + $0x100] sm:$0xff] %v385
  %569 = vst [vmem:[#allocation4 + $0x108] sm:$0xff] %v387
  %570 = vst [vmem:[#allocation4 + $0x110] sm:$0xff] %v498
  %571 = vst [vmem:[#allocation4 + $0x118] sm:$0xff] %v500
  %572 = vst [vmem:[#allocation4 + $0x120] sm:$0xff] %v389
  %573 = vst [vmem:[#allocation4 + $0x128] sm:$0xff] %v391
  %574 = vst [vmem:[#allocation4 + $0x130] sm:$0xff] %v502
  %575 = vst [vmem:[#allocation4 + $0x138] sm:$0xff] %v504
  %576 = vst [vmem:[#allocation4 + $0x140] sm:$0xff] %v395
  %577 = vst [vmem:[#allocation4 + $0x148] sm:$0xff] %v397
  %578 = vst [vmem:[#allocation4 + $0x150] sm:$0xff] %v508
  %579 = vst [vmem:[#allocation4 + $0x158] sm:$0xff] %v510
  %580 = vst [vmem:[#allocation4 + $0x160] sm:$0xff] %v399
  %581 = vst [vmem:[#allocation4 + $0x168] sm:$0xff] %v401
  %582 = vst [vmem:[#allocation4 + $0x170] sm:$0xff] %v512
  %583 = vst [vmem:[#allocation4 + $0x178] sm:$0xff] %v514
  %584 = vst [vmem:[#allocation4 + $0x180] sm:$0xff] %v405
  %585 = vst [vmem:[#allocation4 + $0x188] sm:$0xff] %v407
  %586 = vst [vmem:[#allocation4 + $0x190] sm:$0xff] %v518
  %587 = vst [vmem:[#allocation4 + $0x198] sm:$0xff] %v520
  %588 = vst [vmem:[#allocation4 + $0x1a0] sm:$0xff] %v409
  %589 = vst [vmem:[#allocation4 + $0x1a8] sm:$0xff] %v411
  %590 = vst [vmem:[#allocation4 + $0x1b0] sm:$0xff] %v522
  %591 = vst [vmem:[#allocation4 + $0x1b8] sm:$0xff] %v524
  %592 = vst [vmem:[#allocation4 + $0x1c0] sm:$0xff] %v415
  %593 = vst [vmem:[#allocation4 + $0x1c8] sm:$0xff] %v417
  %594 = vst [vmem:[#allocation4 + $0x1d0] sm:$0xff] %v528
  %595 = vst [vmem:[#allocation4 + $0x1d8] sm:$0xff] %v530
  %596 = vst [vmem:[#allocation4 + $0x1e0] sm:$0xff] %v419
  %597 = vst [vmem:[#allocation4 + $0x1e8] sm:$0xff] %v421
  %598 = vst [vmem:[#allocation4 + $0x1f0] sm:$0xff] %v532
  %599 = vst [vmem:[#allocation4 + $0x1f8] sm:$0xff] %v534
  %v600 = vld [vmem:[%s2] sm:$0xff]
  %v601 = vld [vmem:[%s2 + $0x8] sm:$0xff]
  %v602 = vld [vmem:[%s2 + $0x10] sm:$0xff]
  %v603 = vld [vmem:[%s2 + $0x18] sm:$0xff]
  %v604 = vld [vmem:[%s2 + $0x20] sm:$0xff]
  %v605 = vld [vmem:[%s2 + $0x28] sm:$0xff]
  %v606 = vld [vmem:[%s2 + $0x30] sm:$0xff]
  %v607 = vld [vmem:[%s2 + $0x38] sm:$0xff]
  %v608 = vld [vmem:[%s2 + $0x40] sm:$0xff]
  %v609 = vld [vmem:[%s2 + $0x48] sm:$0xff]
  %v610 = vld [vmem:[%s2 + $0x50] sm:$0xff]
  %v611 = vld [vmem:[%s2 + $0x58] sm:$0xff]
  %v612 = vld [vmem:[%s2 + $0x60] sm:$0xff]
  %v613 = vld [vmem:[%s2 + $0x68] sm:$0xff]
  %v614 = vld [vmem:[%s2 + $0x70] sm:$0xff]
  %v615 = vld [vmem:[%s2 + $0x78] sm:$0xff]
  %v616 = vld [vmem:[%s2 + $0x80] sm:$0xff]
  %v617 = vld [vmem:[%s2 + $0x88] sm:$0xff]
  %v618 = vld [vmem:[%s2 + $0x90] sm:$0xff]
  %v619 = vld [vmem:[%s2 + $0x98] sm:$0xff]
  %v620 = vld [vmem:[%s2 + $0xa0] sm:$0xff]
  %v621 = vld [vmem:[%s2 + $0xa8] sm:$0xff]
  %v622 = vld [vmem:[%s2 + $0xb0] sm:$0xff]
  %v623 = vld [vmem:[%s2 + $0xb8] sm:$0xff]
  %v624 = vld [vmem:[%s2 + $0xc0] sm:$0xff]
  %v625 = vld [vmem:[%s2 + $0xc8] sm:$0xff]
  %v626 = vld [vmem:[%s2 + $0xd0] sm:$0xff]
  %v627 = vld [vmem:[%s2 + $0xd8] sm:$0xff]
  %v628 = vld [vmem:[%s2 + $0xe0] sm:$0xff]
  %v629 = vld [vmem:[%s2 + $0xe8] sm:$0xff]
  %v630 = vld [vmem:[%s2 + $0xf0] sm:$0xff]
  %v631 = vld [vmem:[%s2 + $0xf8] sm:$0xff]
  %s632 = smul.u32 0, 8
  %s633 = ssub.s32 8, %s632
  %p634 = scmp.lt.s32.totalorder %s633, 8
  %s635 = scalar_select %p634, %s633, 8
  %v636 = vld [vmem:[#allocation2] sm:$0xff]
  %v637 = vld [vmem:[#allocation2 + $0x8] sm:$0xff]
  %v638 = vld [vmem:[#allocation3] sm:$0xff]
  %v639 = vld [vmem:[#allocation3 + $0x8] sm:$0xff]
  // While loop
  $region30: #{lstm_forward.3} parent=0 // loop_pre_header
    _
  $region31: #{lstm_forward.3} parent=0 // loop_header
    %s641 = sphi 0, %s643
    %p642 = scmp.ge.s32.totalorder %s641, %s635
    %v646 = vphi %v636, %v962
    %v647 = vphi %v637, %v963
    %v648 = vphi %v638, %v958
    %v649 = vphi %v639, %v959
  $region32: #{lstm_forward.3} parent=0 // loop_header_branch
    %645 = sbr.rel (%p642) target = $region36
  $region33: #{lstm_forward.3} parent=0 // loop_body
    %s650 = smul.u32 %s641, 8
    %s651 = smul.addr %s650, 8
    %s652 = scalar_lea.vmem [#allocation4], %s651
    %v653 = vld [vmem:[%s652] sm:$0xff]
    %v654 = vld [vmem:[%s652 + $0x8] sm:$0xff]
    %v655 = vld [vmem:[%s652 + $0x10] sm:$0xff]
    %v656 = vld [vmem:[%s652 + $0x18] sm:$0xff]
    %v657 = vld [vmem:[%s652 + $0x20] sm:$0xff]
    %v658 = vld [vmem:[%s652 + $0x28] sm:$0xff]
    %v659 = vld [vmem:[%s652 + $0x30] sm:$0xff]
    %v660 = vld [vmem:[%s652 + $0x38] sm:$0xff]
    %v661 = vpack.c.bf16 %v647, %v646
    %v694 = vunpack.c.l.b16 %v600
    %v695 = vunpack.c.h.b16 %v600
    %v696 = vunpack.c.l.b16 %v601
    %v697 = vunpack.c.h.b16 %v601
    %v698 = vunpack.c.l.b16 %v602
    %v699 = vunpack.c.h.b16 %v602
    %v700 = vunpack.c.l.b16 %v603
    %v701 = vunpack.c.h.b16 %v603
    %v702 = vunpack.c.l.b16 %v604
    %v703 = vunpack.c.h.b16 %v604
    %v704 = vunpack.c.l.b16 %v605
    %v705 = vunpack.c.h.b16 %v605
    %v706 = vunpack.c.l.b16 %v606
    %v707 = vunpack.c.h.b16 %v606
    %v708 = vunpack.c.l.b16 %v607
    %v709 = vunpack.c.h.b16 %v607
    %v710 = vunpack.c.l.b16 %v608
    %v711 = vunpack.c.h.b16 %v608
    %v712 = vunpack.c.l.b16 %v609
    %v713 = vunpack.c.h.b16 %v609
    %v714 = vunpack.c.l.b16 %v610
    %v715 = vunpack.c.h.b16 %v610
    %v716 = vunpack.c.l.b16 %v611
    %v717 = vunpack.c.h.b16 %v611
    %v718 = vunpack.c.l.b16 %v612
    %v719 = vunpack.c.h.b16 %v612
    %v720 = vunpack.c.l.b16 %v613
    %v721 = vunpack.c.h.b16 %v613
    %v722 = vunpack.c.l.b16 %v614
    %v723 = vunpack.c.h.b16 %v614
    %v724 = vunpack.c.l.b16 %v615
    %v725 = vunpack.c.h.b16 %v615
    %v726 = vunpack.c.l.b16 %v616
    %v727 = vunpack.c.h.b16 %v616
    %v728 = vunpack.c.l.b16 %v617
    %v729 = vunpack.c.h.b16 %v617
    %v730 = vunpack.c.l.b16 %v618
    %v731 = vunpack.c.h.b16 %v618
    %v732 = vunpack.c.l.b16 %v619
    %v733 = vunpack.c.h.b16 %v619
    %v734 = vunpack.c.l.b16 %v620
    %v735 = vunpack.c.h.b16 %v620
    %v736 = vunpack.c.l.b16 %v621
    %v737 = vunpack.c.h.b16 %v621
    %v738 = vunpack.c.l.b16 %v622
    %v739 = vunpack.c.h.b16 %v622
    %v740 = vunpack.c.l.b16 %v623
    %v741 = vunpack.c.h.b16 %v623
    %v742 = vunpack.c.l.b16 %v624
    %v743 = vunpack.c.h.b16 %v624
    %v744 = vunpack.c.l.b16 %v625
    %v745 = vunpack.c.h.b16 %v625
    %v746 = vunpack.c.l.b16 %v626
    %v747 = vunpack.c.h.b16 %v626
    %v748 = vunpack.c.l.b16 %v627
    %v749 = vunpack.c.h.b16 %v627
    %v750 = vunpack.c.l.b16 %v628
    %v751 = vunpack.c.h.b16 %v628
    %v752 = vunpack.c.l.b16 %v629
    %v753 = vunpack.c.h.b16 %v629
    %v754 = vunpack.c.l.b16 %v630
    %v755 = vunpack.c.h.b16 %v630
    %v756 = vunpack.c.l.b16 %v631
    %v757 = vunpack.c.h.b16 %v631
    %v758 = vpack.c.b16 %v698, %v694
    %v759 = vpack.c.b16 %v699, %v695
    %v760 = vpack.c.b16 %v700, %v696
    %v761 = vpack.c.b16 %v701, %v697
    %v762 = vpack.c.b16 %v706, %v702
    %v763 = vpack.c.b16 %v707, %v703
    %v764 = vpack.c.b16 %v708, %v704
    %v765 = vpack.c.b16 %v709, %v705
    %v766 = vpack.c.b16 %v714, %v710
    %v767 = vpack.c.b16 %v715, %v711
    %v768 = vpack.c.b16 %v716, %v712
    %v769 = vpack.c.b16 %v717, %v713
    %v770 = vpack.c.b16 %v722, %v718
    %v771 = vpack.c.b16 %v723, %v719
    %v772 = vpack.c.b16 %v724, %v720
    %v773 = vpack.c.b16 %v725, %v721
    %v774 = vpack.c.b16 %v730, %v726
    %v775 = vpack.c.b16 %v731, %v727
    %v776 = vpack.c.b16 %v732, %v728
    %v777 = vpack.c.b16 %v733, %v729
    %v778 = vpack.c.b16 %v738, %v734
    %v779 = vpack.c.b16 %v739, %v735
    %v780 = vpack.c.b16 %v740, %v736
    %v781 = vpack.c.b16 %v741, %v737
    %v782 = vpack.c.b16 %v746, %v742
    %v783 = vpack.c.b16 %v747, %v743
    %v784 = vpack.c.b16 %v748, %v744
    %v785 = vpack.c.b16 %v749, %v745
    %v786 = vpack.c.b16 %v754, %v750
    %v787 = vpack.c.b16 %v755, %v751
    %v788 = vpack.c.b16 %v756, %v752
    %v789 = vpack.c.b16 %v757, %v753
    %822 = vmatprep.subr.bf16.mxu0 %v759
    %823 = vmatpush1.bf16.msra.mxu0 %v758
    %824 = vmatprep.subr.bf16.mxu0 %v763
    %825 = vmatpush1.bf16.msra.mxu0 %v762
    %826 = vmatprep.subr.bf16.mxu0 %v767
    %827 = vmatpush1.bf16.msra.mxu0 %v766
    %828 = vmatprep.subr.bf16.mxu0 %v771
    %829 = vmatpush1.bf16.msra.mxu0 %v770
    %830 = vmatprep.subr.bf16.mxu0 %v775
    %831 = vmatpush1.bf16.msra.mxu0 %v774
    %832 = vmatprep.subr.bf16.mxu0 %v779
    %833 = vmatpush1.bf16.msra.mxu0 %v778
    %834 = vmatprep.subr.bf16.mxu0 %v783
    %835 = vmatpush1.bf16.msra.mxu0 %v782
    %836 = vmatprep.subr.bf16.mxu0 %v787
    %837 = vmatpush1.bf16.msra.mxu0 %v786
    %838 = vmatprep.subr.bf16.mxu0 0
    %839 = vmatpush1.bf16.msra.mxu0 0
    %840 = vmatprep.subr.bf16.mxu0 0
    %841 = vmatpush1.bf16.msra.mxu0 0
    %842 = vmatprep.subr.bf16.mxu0 0
    %843 = vmatpush1.bf16.msra.mxu0 0
    %844 = vmatprep.subr.bf16.mxu0 0
    %845 = vmatpush1.bf16.msra.mxu0 0
    %846 = vmatprep.subr.bf16.mxu0 0
    %847 = vmatpush1.bf16.msra.mxu0 0
    %848 = vmatprep.subr.bf16.mxu0 0
    %849 = vmatpush1.bf16.msra.mxu0 0
    %850 = vmatprep.subr.bf16.mxu0 0
    %851 = vmatpush1.bf16.msra.mxu0 0
    %852 = vmatprep.subr.bf16.mxu0 0
    %853 = vmatpush1.bf16.msra.mxu0 0
    %854 = vmatprep.mubr.bf16.mxu0 0
    %855 = vmatmul.mubr.bf16.gmra.mrb[0].mxu0 %v661
    %v856 = vpop.f32.mrb[0].mxu0
    %v857 = vadd.f32 0.0, %v856
    %v858 = vpop.f32.mrb[0].mxu0
    %v859 = vadd.f32 0.0, %v858
    %v860 = vpop.f32.mrb[0].mxu0
    %v861 = vadd.f32 0.0, %v860
    %v862 = vpop.f32.mrb[0].mxu0
    %v863 = vadd.f32 0.0, %v862
    %864 = vdwg.mxu0
    %865 = vmatprep.subr.bf16.mxu0 %v761
    %866 = vmatpush1.bf16.msra.mxu0 %v760
    %867 = vmatprep.subr.bf16.mxu0 %v765
    %868 = vmatpush1.bf16.msra.mxu0 %v764
    %869 = vmatprep.subr.bf16.mxu0 %v769
    %870 = vmatpush1.bf16.msra.mxu0 %v768
    %871 = vmatprep.subr.bf16.mxu0 %v773
    %872 = vmatpush1.bf16.msra.mxu0 %v772
    %873 = vmatprep.subr.bf16.mxu0 %v777
    %874 = vmatpush1.bf16.msra.mxu0 %v776
    %875 = vmatprep.subr.bf16.mxu0 %v781
    %876 = vmatpush1.bf16.msra.mxu0 %v780
    %877 = vmatprep.subr.bf16.mxu0 %v785
    %878 = vmatpush1.bf16.msra.mxu0 %v784
    %879 = vmatprep.subr.bf16.mxu0 %v789
    %880 = vmatpush1.bf16.msra.mxu0 %v788
    %881 = vmatprep.subr.bf16.mxu0 0
    %882 = vmatpush1.bf16.msra.mxu0 0
    %883 = vmatprep.subr.bf16.mxu0 0
    %884 = vmatpush1.bf16.msra.mxu0 0
    %885 = vmatprep.subr.bf16.mxu0 0
    %886 = vmatpush1.bf16.msra.mxu0 0
    %887 = vmatprep.subr.bf16.mxu0 0
    %888 = vmatpush1.bf16.msra.mxu0 0
    %889 = vmatprep.subr.bf16.mxu0 0
    %890 = vmatpush1.bf16.msra.mxu0 0
    %891 = vmatprep.subr.bf16.mxu0 0
    %892 = vmatpush1.bf16.msra.mxu0 0
    %893 = vmatprep.subr.bf16.mxu0 0
    %894 = vmatpush1.bf16.msra.mxu0 0
    %895 = vmatprep.subr.bf16.mxu0 0
    %896 = vmatpush1.bf16.msra.mxu0 0
    %897 = vmatprep.mubr.bf16.mxu0 0
    %898 = vmatmul.mubr.bf16.gmra.mrb[0].mxu0 %v661
    %v899 = vpop.f32.mrb[0].mxu0
    %v900 = vadd.f32 0.0, %v899
    %v901 = vpop.f32.mrb[0].mxu0
    %v902 = vadd.f32 0.0, %v901
    %v903 = vpop.f32.mrb[0].mxu0
    %v904 = vadd.f32 0.0, %v903
    %v905 = vpop.f32.mrb[0].mxu0
    %v906 = vadd.f32 0.0, %v905
    %907 = vdwg.mxu0
    %v908 = vadd.f32 %v653, %v857
    %v909 = vadd.f32 %v654, %v859
    %v910 = vadd.f32 %v655, %v900
    %v911 = vadd.f32 %v656, %v902
    %v912 = vadd.f32 %v657, %v861
    %v913 = vadd.f32 %v658, %v863
    %v914 = vadd.f32 %v659, %v904
    %v915 = vadd.f32 %v660, %v906
    %v916 = vxor.u32 %v908, 2147483648
    %v917 = vxor.u32 %v912, 2147483648
    %v918 = vmul.f32 %v916, 1.442695
    %v919 = vpow.pop %v918
    %v920 = vmul.f32 %v917, 1.442695
    %v921 = vpow.pop %v920
    %v922 = vadd.f32 %v919, 1.0
    %v923 = vadd.f32 %v921, 1.0
    %v924 = vrcp.pop %v922
    %v925 = vmul.f32 1.0, %v924
    %v926 = vrcp.pop %v923
    %v927 = vmul.f32 1.0, %v926
    %v928 = vxor.u32 %v909, 2147483648
    %v929 = vxor.u32 %v913, 2147483648
    %v930 = vmul.f32 %v928, 1.442695
    %v931 = vpow.pop %v930
    %v932 = vmul.f32 %v929, 1.442695
    %v933 = vpow.pop %v932
    %v934 = vadd.f32 %v931, 1.0
    %v935 = vadd.f32 %v933, 1.0
    %v936 = vrcp.pop %v934
    %v937 = vmul.f32 1.0, %v936
    %v938 = vrcp.pop %v935
    %v939 = vmul.f32 1.0, %v938
    %v940 = vtanh.pop %v910
    %v941 = vtanh.pop %v914
    %v942 = vxor.u32 %v911, 2147483648
    %v943 = vxor.u32 %v915, 2147483648
    %v944 = vmul.f32 %v942, 1.442695
    %v945 = vpow.pop %v944
    %v946 = vmul.f32 %v943, 1.442695
    %v947 = vpow.pop %v946
    %v948 = vadd.f32 %v945, 1.0
    %v949 = vadd.f32 %v947, 1.0
    %v950 = vrcp.pop %v948
    %v951 = vmul.f32 1.0, %v950
    %v952 = vrcp.pop %v949
    %v953 = vmul.f32 1.0, %v952
    %v954 = vmul.f32 %v937, %v648
    %v955 = vmul.f32 %v939, %v649
    %v956 = vmul.f32 %v925, %v940
    %v957 = vmul.f32 %v927, %v941
    %v958 = vadd.f32 %v954, %v956
    %v959 = vadd.f32 %v955, %v957
    %v960 = vtanh.pop %v958
    %v961 = vtanh.pop %v959
    %v962 = vmul.f32 %v951, %v960
    %v963 = vmul.f32 %v953, %v961
  $region34: #{lstm_forward.3} parent=0 // loop_footer
    %s643 = sadd.s32 %s641, 1
  $region35: #{lstm_forward.3} parent=0 // loop_footer_branch
    %640 = sbr.rel target = $region31
  $region36: #{lstm_forward.3} parent=0 // loop_exit
    _
  %964 = vst [vmem:[#allocation2] sm:$0xff] %v646
  %965 = vst [vmem:[#allocation2 + $0x8] sm:$0xff] %v647
  %966 = vst [vmem:[#allocation3] sm:$0xff] %v648
  %967 = vst [vmem:[#allocation3 + $0x8] sm:$0xff] %v649
  // Predicated region
  $region37: #{lstm_forward.3} parent=0 // pred_check
    %p968 = pneg %p24
  $region38: #{lstm_forward.3} parent=0 // pred_check_branch
    %970 = sbr.rel (%p968) target = $region40
  $region39: #{lstm_forward.3} parent=0 // pred_region
    %v971 = vpack.c.bf16 %v647, %v646
    %v972 = vld [vmem:[%s4] sm:$0xf]
    %v973 = vld [vmem:[%s4 + $0x4] sm:$0xf]
    %v974 = vld [vmem:[%s4 + $0x8] sm:$0xf]
    %v975 = vld [vmem:[%s4 + $0xc] sm:$0xf]
    %v976 = vld [vmem:[%s4 + $0x10] sm:$0xf]
    %v977 = vld [vmem:[%s4 + $0x14] sm:$0xf]
    %v978 = vld [vmem:[%s4 + $0x18] sm:$0xf]
    %v979 = vld [vmem:[%s4 + $0x1c] sm:$0xf]
    %v980 = vld [vmem:[%s4 + $0x20] sm:$0xf]
    %v981 = vld [vmem:[%s4 + $0x24] sm:$0xf]
    %v982 = vld [vmem:[%s4 + $0x28] sm:$0xf]
    %v983 = vld [vmem:[%s4 + $0x2c] sm:$0xf]
    %v984 = vld [vmem:[%s4 + $0x30] sm:$0xf]
    %v985 = vld [vmem:[%s4 + $0x34] sm:$0xf]
    %v986 = vld [vmem:[%s4 + $0x38] sm:$0xf]
    %v987 = vld [vmem:[%s4 + $0x3c] sm:$0xf]
    %v988 = vld [vmem:[%s5] sm:$0x1]
    %v990 = vlaneseq
    %v991 = vshrl.u32 %v990, 7
    %v992 = vsub.s32 0, %v991
    %v993 = vrot.slane %v988, %v992
    %v1011 = vunpack.c.l.b16 %v972
    %v1012 = vunpack.c.l.b16 %v973
    %v1013 = vunpack.c.l.b16 %v974
    %v1014 = vunpack.c.l.b16 %v975
    %v1015 = vunpack.c.l.b16 %v976
    %v1016 = vunpack.c.l.b16 %v977
    %v1017 = vunpack.c.l.b16 %v978
    %v1018 = vunpack.c.l.b16 %v979
    %v1019 = vunpack.c.l.b16 %v980
    %v1020 = vunpack.c.l.b16 %v981
    %v1021 = vunpack.c.l.b16 %v982
    %v1022 = vunpack.c.l.b16 %v983
    %v1023 = vunpack.c.l.b16 %v984
    %v1024 = vunpack.c.l.b16 %v985
    %v1025 = vunpack.c.l.b16 %v986
    %v1026 = vunpack.c.l.b16 %v987
    %v1027 = vpack.c.b16 %v1012, %v1011
    %v1028 = vpack.c.b16 %v1014, %v1013
    %v1029 = vpack.c.b16 %v1016, %v1015
    %v1030 = vpack.c.b16 %v1018, %v1017
    %v1031 = vpack.c.b16 %v1020, %v1019
    %v1032 = vpack.c.b16 %v1022, %v1021
    %v1033 = vpack.c.b16 %v1024, %v1023
    %v1034 = vpack.c.b16 %v1026, %v1025
    %1043 = vmatprep.subr.bf16.mxu0 0
    %1044 = vmatpush1.bf16.msra.mxu0 %v1027
    %1045 = vmatprep.subr.bf16.mxu0 0
    %1046 = vmatpush1.bf16.msra.mxu0 %v1028
    %1047 = vmatprep.subr.bf16.mxu0 0
    %1048 = vmatpush1.bf16.msra.mxu0 %v1029
    %1049 = vmatprep.subr.bf16.mxu0 0
    %1050 = vmatpush1.bf16.msra.mxu0 %v1030
    %1051 = vmatprep.subr.bf16.mxu0 0
    %1052 = vmatpush1.bf16.msra.mxu0 %v1031
    %1053 = vmatprep.subr.bf16.mxu0 0
    %1054 = vmatpush1.bf16.msra.mxu0 %v1032
    %1055 = vmatprep.subr.bf16.mxu0 0
    %1056 = vmatpush1.bf16.msra.mxu0 %v1033
    %1057 = vmatprep.subr.bf16.mxu0 0
    %1058 = vmatpush1.bf16.msra.mxu0 %v1034
    %1059 = vmatprep.subr.bf16.mxu0 0
    %1060 = vmatpush1.bf16.msra.mxu0 0
    %1061 = vmatprep.subr.bf16.mxu0 0
    %1062 = vmatpush1.bf16.msra.mxu0 0
    %1063 = vmatprep.subr.bf16.mxu0 0
    %1064 = vmatpush1.bf16.msra.mxu0 0
    %1065 = vmatprep.subr.bf16.mxu0 0
    %1066 = vmatpush1.bf16.msra.mxu0 0
    %1067 = vmatprep.subr.bf16.mxu0 0
    %1068 = vmatpush1.bf16.msra.mxu0 0
    %1069 = vmatprep.subr.bf16.mxu0 0
    %1070 = vmatpush1.bf16.msra.mxu0 0
    %1071 = vmatprep.subr.bf16.mxu0 0
    %1072 = vmatpush1.bf16.msra.mxu0 0
    %1073 = vmatprep.subr.bf16.mxu0 0
    %1074 = vmatpush1.bf16.msra.mxu0 0
    %1075 = vmatprep.mubr.bf16.mxu0 0
    %1076 = vmatmul.mubr.bf16.gmra.mrb[0].mxu0 %v971
    %v1077 = vpop.f32.mrb[0].mxu0
    %v1078 = vadd.f32 %v993, %v1077
    %v1079 = vpop.f32.mrb[0].mxu0
    %v1080 = vpop.f32.mrb[0].mxu0
    %v1081 = vadd.f32 %v993, %v1080
    %v1082 = vpop.f32.mrb[0].mxu0
    %1083 = vdwg.mxu0
    %1084 = vst [vmem:[%s6] sm:$0xff] %v1078
    %1085 = vst [vmem:[%s6 + $0x8] sm:$0xff] %v1081
  $region40: #{lstm_forward.3} parent=0 // pred_fallthru
    _
  // Predicated region
  $region41: #{lstm_forward.3} parent=0 // pred_check
    _
  $region42: #{lstm_forward.3} parent=0 // pred_check_branch
    %1087 = sbr.rel (0) target = $region44
  $region43: #{lstm_forward.3} parent=0 // pred_region
    _
  $region44: #{lstm_forward.3} parent=0 // pred_fallthru
    _
  // Predicated region
  $region45: #{lstm_forward.3} parent=0 // pred_check
    _
  $region46: #{lstm_forward.3} parent=0 // pred_check_branch
    %1089 = sbr.rel (0) target = $region48
  $region47: #{lstm_forward.3} parent=0 // pred_region
    _
  $region48: #{lstm_forward.3} parent=0 // pred_fallthru
    _

</llo_original>
